<compile_context>
chip_gen: v7x
topology: tpu7x:2x2x1
jax: 0.10.0
libtpu: 0.0.40
codegen_flags: <defaults>
</compile_context>

<pallas_src>
import functools

import jax
import jax.numpy as jnp
from jax.experimental import pallas as pl
from jax.experimental.pallas import tpu as pltpu


def _round_up(x, m):
    return (x + m - 1) // m * m


def _default_batch_tile():
    """128-row batch tiles on v5e (4x128 MXU, 1 vst slot), 256 elsewhere."""
    try:
        kind = jax.devices()[0].device_kind.lower()
    except Exception:
        return 256
    return 128 if ("v5 lite" in kind or "v5e" in kind) else 256


def _weight_spec(shape, single_buffer):
    """Resident (constant index_map) block; single-buffered to halve its VMEM."""
    if single_buffer:
        try:
            return pl.BlockSpec(shape, lambda i: (0, 0),
                                pipeline_mode=pl.Buffered(1))
        except TypeError:  # older JAX without pipeline_mode on BlockSpec
            pass
    return pl.BlockSpec(shape, lambda i: (0, 0))


def _mlb_kernel(x0_ref, x1_ref, w0_ref, b0_ref, w1_ref, b1_ref, wo_ref, bo_ref,
                o_ref):
    in_dt = x0_ref.dtype
    # linear0 / linear1 (f32 MXU accumulation) + activ_input = relu.
    h0 = jnp.dot(x0_ref[...], w0_ref[...],
                 preferred_element_type=jnp.float32) + b0_ref[...]
    h1 = jnp.dot(x1_ref[...], w1_ref[...],
                 preferred_element_type=jnp.float32) + b1_ref[...]
    # Cast back to the input dtype: matches the module's rounding for bf16 models
    # and keeps the second matmul on the fast native MXU path (no-op for f32).
    h0 = jnp.maximum(h0, 0.0).astype(in_dt)
    h1 = jnp.maximum(h1, 0.0).astype(in_dt)
    # dropout_input = 0, normalize = False, dropout_pre_lin = 0 (default config).
    z = h0 * h1                                   # bilinear (Hadamard) fusion
    out = jnp.dot(z, wo_ref[...],
                  preferred_element_type=jnp.float32) + bo_ref[...]
    # activ_output = relu; dropout_output = 0.
    o_ref[...] = jnp.maximum(out, 0.0).astype(o_ref.dtype)


def mlb_prepare_params(w0, b0, w1, b1, wo, bo):
    """One-time parameter prep: pad mm_dim / out_dim to 128-lane multiples.

    Do this once when loading parameters (NOT per forward call) so the forward
    pass never re-materializes padded weights in HBM.
    Zero padding is exact: padded hidden lanes stay 0 through relu/Hadamard and
    padded output lanes are sliced away by the wrapper.
    """
    mm_dim = w0.shape[1]
    out_dim = wo.shape[1]
    mm_pad = _round_up(mm_dim, 128)
    out_pad = _round_up(out_dim, 128)
    dtype = w0.dtype

    def pad2(a, rows, cols):
        a = a.reshape((-1, a.shape[-1]))
        return jnp.zeros((rows, cols), dtype).at[:a.shape[0], :a.shape[1]].set(a)

    w0p = pad2(w0, w0.shape[0], mm_pad)
    b0p = pad2(b0, 1, mm_pad)
    w1p = pad2(w1, w1.shape[0], mm_pad)
    b1p = pad2(b1, 1, mm_pad)
    wop = pad2(wo, mm_pad, out_pad)
    bop = pad2(bo, 1, out_pad)
    return (w0p, b0p, w1p, b1p, wop, bop)


@functools.partial(jax.jit,
                   static_argnames=("out_dim", "tb", "single_buffer_weights"))
def mlb_forward(x0, x1, params, *, out_dim, tb=256, single_buffer_weights=True):
    """Fused MLB forward.

    x0:(B,in0), x1:(B,in1); params from `mlb_prepare_params` (lane-padded,
    (in,out)-layout weights and (1,out) biases); out_dim: unpadded output dim.
    """
    w0p, b0p, w1p, b1p, wop, bop = params
    B, in0 = x0.shape
    _, in1 = x1.shape
    mm_pad = w0p.shape[1]
    out_pad = wop.shape[1]
    dtype = x0.dtype

    # --- Batch tiling: >=2 steps when B > 8 (v7x megacore sharding + pipelining),
    # tile sized to balance the steps and minimize zero-row padding.
    n_steps = max(-(-B // tb), 1)
    if B > 8:
        n_steps = max(n_steps, 2)
    tb_eff = _round_up(-(-B // n_steps), 8)
    Bp = tb_eff * n_steps

    x0p = jnp.pad(x0, ((0, Bp - B), (0, 0))) if Bp != B else x0
    x1p = jnp.pad(x1, ((0, Bp - B), (0, 0))) if Bp != B else x1

    # --- VMEM budget: resident weights (+ buffering) + double-buffered x/out
    # tiles + f32 intermediates, with headroom; capped at v7x physical (64 MiB).
    itemsize = jnp.dtype(dtype).itemsize
    n_wbuf = 1 if single_buffer_weights else 2
    weight_bytes = n_wbuf * ((in0 + in1) * mm_pad + mm_pad * out_pad
                             + 2 * mm_pad + out_pad) * itemsize
    io_bytes = 2 * tb_eff * (in0 + in1 + out_pad) * itemsize
    interm_bytes = 3 * tb_eff * mm_pad * 4
    vmem_limit = int(min(
        max(1.5 * (weight_bytes + io_bytes + interm_bytes) + (4 << 20), 16 << 20),
        64 << 20))

    out = pl.pallas_call(
        _mlb_kernel,
        out_shape=jax.ShapeDtypeStruct((Bp, out_pad), dtype),
        grid_spec=pltpu.PrefetchScalarGridSpec(
            num_scalar_prefetch=0,
            grid=(n_steps,),
            in_specs=[
                pl.BlockSpec((tb_eff, in0), lambda i: (i, 0)),   # x0 tile
                pl.BlockSpec((tb_eff, in1), lambda i: (i, 0)),   # x1 tile
                _weight_spec((in0, mm_pad), single_buffer_weights),   # W0
                _weight_spec((1, mm_pad), single_buffer_weights),     # b0
                _weight_spec((in1, mm_pad), single_buffer_weights),   # W1
                _weight_spec((1, mm_pad), single_buffer_weights),     # b1
                _weight_spec((mm_pad, out_pad), single_buffer_weights),  # W_out
                _weight_spec((1, out_pad), single_buffer_weights),       # b_out
            ],
            out_specs=pl.BlockSpec((tb_eff, out_pad), lambda i: (i, 0)),
        ),
        compiler_params=pltpu.CompilerParams(
            dimension_semantics=("parallel",),
            vmem_limit_bytes=vmem_limit),
    )(x0p, x1p, w0p, b0p, w1p, b1p, wop, bop)

    # Strip batch / lane padding.
    return out[:B, :out_dim]


def mlb_reference(x0, x1, w0, b0, w1, b1, wo, bo):
    h0 = jnp.maximum(x0 @ w0 + b0, 0.0)
    h1 = jnp.maximum(x1 @ w1 + b1, 0.0)
    z = h0 * h1
    return jnp.maximum(z @ wo + bo, 0.0)


if __name__ == "__main__":
    # Small shapes consistent with the module: two input modalities of
    # different feature dims, a multimodal dim, an output dim.
    B = 16
    input_dims = (32, 48)
    mm_dim = 128
    output_dim = 64

    key = jax.random.PRNGKey(0)
    k = jax.random.split(key, 8)

    x0 = jax.random.normal(k[0], (B, input_dims[0]), jnp.float32)
    x1 = jax.random.normal(k[1], (B, input_dims[1]), jnp.float32)

    # Deterministic synthetic parameters (nn.Linear weights stored transposed).
    w0 = jax.random.normal(k[2], (input_dims[0], mm_dim), jnp.float32) * 0.05
    b0 = jax.random.normal(k[3], (1, mm_dim), jnp.float32) * 0.05
    w1 = jax.random.normal(k[4], (input_dims[1], mm_dim), jnp.float32) * 0.05
    b1 = jax.random.normal(k[5], (1, mm_dim), jnp.float32) * 0.05
    wo = jax.random.normal(k[6], (mm_dim, output_dim), jnp.float32) * 0.05
    bo = jax.random.normal(k[7], (1, output_dim), jnp.float32) * 0.05

    # One-time parameter prep (padding hoisted out of the per-forward path).
    params = mlb_prepare_params(w0, b0, w1, b1, wo, bo)
    tb = _default_batch_tile()

    try:
        out = jax.block_until_ready(
            mlb_forward(x0, x1, params, out_dim=output_dim, tb=tb))
    except Exception:
        # Fallback in case this JAX build rejects single-buffered weight specs.
        out = jax.block_until_ready(
            mlb_forward(x0, x1, params, out_dim=output_dim, tb=tb,
                        single_buffer_weights=False))

    ref = mlb_reference(x0, x1, w0, b0, w1, b1, wo, bo)
    assert out.shape == (B, output_dim)
    assert jnp.allclose(out, ref, atol=1e-4, rtol=1e-4), "mismatch vs reference"

    print("KERNEL_OK")
</pallas_src>

<mosaic_0001>
module attributes {stable_mosaic.version = 11 : i64} {
  func.func @_mlb_kernel(%arg0: i32, %arg1: memref<8x32xf32, #tpu.memory_space<vmem>>, %arg2: memref<8x48xf32, #tpu.memory_space<vmem>>, %arg3: memref<32x128xf32, #tpu.memory_space<vmem>>, %arg4: memref<1x128xf32, #tpu.memory_space<vmem>>, %arg5: memref<48x128xf32, #tpu.memory_space<vmem>>, %arg6: memref<1x128xf32, #tpu.memory_space<vmem>>, %arg7: memref<128x128xf32, #tpu.memory_space<vmem>>, %arg8: memref<1x128xf32, #tpu.memory_space<vmem>>, %arg9: memref<8x128xf32, #tpu.memory_space<vmem>>) attributes {dimension_semantics = [#tpu.dimension_semantics<parallel>], iteration_bounds = array<i64: 2>, scalar_prefetch = 0 : i64, scratch_operands = 0 : i64, tpu.core_type = #tpu.core_type<tc>, window_params = [{transform_indices = @transform_0, window_bounds = array<i64: 8, 32>}, {transform_indices = @transform_1, window_bounds = array<i64: 8, 48>}, {pipeline_mode = #tpu.pipeline_mode<synchronous>, transform_indices = @transform_2, window_bounds = array<i64: 32, 128>}, {pipeline_mode = #tpu.pipeline_mode<synchronous>, transform_indices = @transform_3, window_bounds = array<i64: 1, 128>}, {pipeline_mode = #tpu.pipeline_mode<synchronous>, transform_indices = @transform_4, window_bounds = array<i64: 48, 128>}, {pipeline_mode = #tpu.pipeline_mode<synchronous>, transform_indices = @transform_5, window_bounds = array<i64: 1, 128>}, {pipeline_mode = #tpu.pipeline_mode<synchronous>, transform_indices = @transform_6, window_bounds = array<i64: 128, 128>}, {pipeline_mode = #tpu.pipeline_mode<synchronous>, transform_indices = @transform_7, window_bounds = array<i64: 1, 128>}, {transform_indices = @transform_8, window_bounds = array<i64: 8, 128>}]} {
    %c0 = arith.constant 0 : index
    %c0_0 = arith.constant 0 : index
    %0 = vector.load %arg1[%c0, %c0_0] : memref<8x32xf32, #tpu.memory_space<vmem>>, vector<8x32xf32>
    %c0_1 = arith.constant 0 : index
    %c0_2 = arith.constant 0 : index
    %1 = vector.load %arg3[%c0_1, %c0_2] : memref<32x128xf32, #tpu.memory_space<vmem>>, vector<32x128xf32>
    %cst = arith.constant dense<0.000000e+00> : vector<8x128xf32>
    %2 = tpu.matmul %0, %1, %cst {dimension_numbers = #tpu.dot_dimension_numbers<[1], [0], [0], [1], [0, 0, 1, 1], [], []>} : vector<8x32xf32>, vector<32x128xf32>, vector<8x128xf32> -> vector<8x128xf32>
    %c0_3 = arith.constant 0 : index
    %c0_4 = arith.constant 0 : index
    %3 = vector.load %arg4[%c0_3, %c0_4] : memref<1x128xf32, #tpu.memory_space<vmem>>, vector<1x128xf32>
    %4 = vector.broadcast %3 : vector<1x128xf32> to vector<8x128xf32>
    %5 = arith.addf %2, %4 : vector<8x128xf32>
    %c0_5 = arith.constant 0 : index
    %c0_6 = arith.constant 0 : index
    %6 = vector.load %arg2[%c0_5, %c0_6] : memref<8x48xf32, #tpu.memory_space<vmem>>, vector<8x48xf32>
    %c0_7 = arith.constant 0 : index
    %c0_8 = arith.constant 0 : index
    %7 = vector.load %arg5[%c0_7, %c0_8] : memref<48x128xf32, #tpu.memory_space<vmem>>, vector<48x128xf32>
    %cst_9 = arith.constant dense<0.000000e+00> : vector<8x128xf32>
    %8 = tpu.matmul %6, %7, %cst_9 {dimension_numbers = #tpu.dot_dimension_numbers<[1], [0], [0], [1], [0, 0, 1, 1], [], []>} : vector<8x48xf32>, vector<48x128xf32>, vector<8x128xf32> -> vector<8x128xf32>
    %c0_10 = arith.constant 0 : index
    %c0_11 = arith.constant 0 : index
    %9 = vector.load %arg6[%c0_10, %c0_11] : memref<1x128xf32, #tpu.memory_space<vmem>>, vector<1x128xf32>
    %10 = vector.broadcast %9 : vector<1x128xf32> to vector<8x128xf32>
    %11 = arith.addf %8, %10 : vector<8x128xf32>
    %cst_12 = arith.constant 0.000000e+00 : f32
    %12 = vector.broadcast %cst_12 : f32 to vector<8x128xf32>
    %13 = arith.maximumf %5, %12 : vector<8x128xf32>
    %cst_13 = arith.constant 0.000000e+00 : f32
    %14 = vector.broadcast %cst_13 : f32 to vector<8x128xf32>
    %15 = arith.maximumf %11, %14 : vector<8x128xf32>
    %16 = arith.mulf %13, %15 : vector<8x128xf32>
    %c0_14 = arith.constant 0 : index
    %c0_15 = arith.constant 0 : index
    %17 = vector.load %arg7[%c0_14, %c0_15] : memref<128x128xf32, #tpu.memory_space<vmem>>, vector<128x128xf32>
    %cst_16 = arith.constant dense<0.000000e+00> : vector<8x128xf32>
    %18 = tpu.matmul %16, %17, %cst_16 {dimension_numbers = #tpu.dot_dimension_numbers<[1], [0], [0], [1], [0, 0, 1, 1], [], []>} : vector<8x128xf32>, vector<128x128xf32>, vector<8x128xf32> -> vector<8x128xf32>
    %c0_17 = arith.constant 0 : index
    %c0_18 = arith.constant 0 : index
    %19 = vector.load %arg8[%c0_17, %c0_18] : memref<1x128xf32, #tpu.memory_space<vmem>>, vector<1x128xf32>
    %20 = vector.broadcast %19 : vector<1x128xf32> to vector<8x128xf32>
    %21 = arith.addf %18, %20 : vector<8x128xf32>
    %cst_19 = arith.constant 0.000000e+00 : f32
    %22 = vector.broadcast %cst_19 : f32 to vector<8x128xf32>
    %23 = arith.maximumf %21, %22 : vector<8x128xf32>
    %c0_20 = arith.constant 0 : index
    %c0_21 = arith.constant 0 : index
    %24 = vector.load %arg9[%c0_20, %c0_21] : memref<8x128xf32, #tpu.memory_space<vmem>>, vector<8x128xf32>
    tpu.vector_store %arg9[%c0_20, %c0_21], %23 {strides = array<i32>} : memref<8x128xf32, #tpu.memory_space<vmem>>, vector<8x128xf32>,
    return
  }
  func.func @transform_0(%arg0: i32) -> (i32, i32) {
    %c0_i32 = arith.constant 0 : i32
    %c0_i32_0 = arith.constant 0 : i32
    return %arg0, %c0_i32 : i32, i32
  }
  func.func @transform_1(%arg0: i32) -> (i32, i32) {
    %c0_i32 = arith.constant 0 : i32
    %c0_i32_0 = arith.constant 0 : i32
    return %arg0, %c0_i32 : i32, i32
  }
  func.func @transform_2(%arg0: i32) -> (i32, i32) {
    %c0_i32 = arith.constant 0 : i32
    %c0_i32_0 = arith.constant 0 : i32
    %c0_i32_1 = arith.constant 0 : i32
    return %c0_i32, %c0_i32_0 : i32, i32
  }
  func.func @transform_3(%arg0: i32) -> (i32, i32) {
    %c0_i32 = arith.constant 0 : i32
    %c0_i32_0 = arith.constant 0 : i32
    %c0_i32_1 = arith.constant 0 : i32
    return %c0_i32, %c0_i32_0 : i32, i32
  }
  func.func @transform_4(%arg0: i32) -> (i32, i32) {
    %c0_i32 = arith.constant 0 : i32
    %c0_i32_0 = arith.constant 0 : i32
    %c0_i32_1 = arith.constant 0 : i32
    return %c0_i32, %c0_i32_0 : i32, i32
  }
  func.func @transform_5(%arg0: i32) -> (i32, i32) {
    %c0_i32 = arith.constant 0 : i32
    %c0_i32_0 = arith.constant 0 : i32
    %c0_i32_1 = arith.constant 0 : i32
    return %c0_i32, %c0_i32_0 : i32, i32
  }
  func.func @transform_6(%arg0: i32) -> (i32, i32) {
    %c0_i32 = arith.constant 0 : i32
    %c0_i32_0 = arith.constant 0 : i32
    %c0_i32_1 = arith.constant 0 : i32
    return %c0_i32, %c0_i32_0 : i32, i32
  }
  func.func @transform_7(%arg0: i32) -> (i32, i32) {
    %c0_i32 = arith.constant 0 : i32
    %c0_i32_0 = arith.constant 0 : i32
    %c0_i32_1 = arith.constant 0 : i32
    return %c0_i32, %c0_i32_0 : i32, i32
  }
  func.func @transform_8(%arg0: i32) -> (i32, i32) {
    %c0_i32 = arith.constant 0 : i32
    %c0_i32_0 = arith.constant 0 : i32
    return %arg0, %c0_i32 : i32, i32
  }
}

module attributes {stable_mosaic.version = 11 : i64} {
  func.func @_mlb_kernel(%arg0: i32, %arg1: memref<8x32xf32, #tpu.memory_space<vmem>>, %arg2: memref<8x48xf32, #tpu.memory_space<vmem>>, %arg3: memref<32x128xf32, #tpu.memory_space<vmem>>, %arg4: memref<1x128xf32, #tpu.memory_space<vmem>>, %arg5: memref<48x128xf32, #tpu.memory_space<vmem>>, %arg6: memref<1x128xf32, #tpu.memory_space<vmem>>, %arg7: memref<128x128xf32, #tpu.memory_space<vmem>>, %arg8: memref<1x128xf32, #tpu.memory_space<vmem>>, %arg9: memref<8x128xf32, #tpu.memory_space<vmem>>) attributes {dimension_semantics = [#tpu.dimension_semantics<parallel>], iteration_bounds = array<i64: 2>, scalar_prefetch = 0 : i64, scratch_operands = 0 : i64, tpu.core_type = #tpu.core_type<tc>, window_params = [{transform_indices = @transform_0, window_bounds = array<i64: 8, 32>}, {transform_indices = @transform_1, window_bounds = array<i64: 8, 48>}, {pipeline_mode = #tpu.pipeline_mode<synchronous>, transform_indices = @transform_2, window_bounds = array<i64: 32, 128>}, {pipeline_mode = #tpu.pipeline_mode<synchronous>, transform_indices = @transform_3, window_bounds = array<i64: 1, 128>}, {pipeline_mode = #tpu.pipeline_mode<synchronous>, transform_indices = @transform_4, window_bounds = array<i64: 48, 128>}, {pipeline_mode = #tpu.pipeline_mode<synchronous>, transform_indices = @transform_5, window_bounds = array<i64: 1, 128>}, {pipeline_mode = #tpu.pipeline_mode<synchronous>, transform_indices = @transform_6, window_bounds = array<i64: 128, 128>}, {pipeline_mode = #tpu.pipeline_mode<synchronous>, transform_indices = @transform_7, window_bounds = array<i64: 1, 128>}, {transform_indices = @transform_8, window_bounds = array<i64: 8, 128>}]} {
    %c0 = arith.constant 0 : index
    %c0_0 = arith.constant 0 : index
    %0 = vector.load %arg1[%c0, %c0_0] : memref<8x32xf32, #tpu.memory_space<vmem>>, vector<8x32xf32>
    %c0_1 = arith.constant 0 : index
    %c0_2 = arith.constant 0 : index
    %1 = vector.load %arg3[%c0_1, %c0_2] : memref<32x128xf32, #tpu.memory_space<vmem>>, vector<32x128xf32>
    %cst = arith.constant dense<0.000000e+00> : vector<8x128xf32>
    %2 = tpu.matmul %0, %1, %cst {dimension_numbers = #tpu.dot_dimension_numbers<[1], [0], [0], [1], [0, 0, 1, 1], [], []>} : vector<8x32xf32>, vector<32x128xf32>, vector<8x128xf32> -> vector<8x128xf32>
    %c0_3 = arith.constant 0 : index
    %c0_4 = arith.constant 0 : index
    %3 = vector.load %arg4[%c0_3, %c0_4] : memref<1x128xf32, #tpu.memory_space<vmem>>, vector<1x128xf32>
    %4 = vector.broadcast %3 : vector<1x128xf32> to vector<8x128xf32>
    %5 = arith.addf %2, %4 : vector<8x128xf32>
    %c0_5 = arith.constant 0 : index
    %c0_6 = arith.constant 0 : index
    %6 = vector.load %arg2[%c0_5, %c0_6] : memref<8x48xf32, #tpu.memory_space<vmem>>, vector<8x48xf32>
    %c0_7 = arith.constant 0 : index
    %c0_8 = arith.constant 0 : index
    %7 = vector.load %arg5[%c0_7, %c0_8] : memref<48x128xf32, #tpu.memory_space<vmem>>, vector<48x128xf32>
    %cst_9 = arith.constant dense<0.000000e+00> : vector<8x128xf32>
    %8 = tpu.matmul %6, %7, %cst_9 {dimension_numbers = #tpu.dot_dimension_numbers<[1], [0], [0], [1], [0, 0, 1, 1], [], []>} : vector<8x48xf32>, vector<48x128xf32>, vector<8x128xf32> -> vector<8x128xf32>
    %c0_10 = arith.constant 0 : index
    %c0_11 = arith.constant 0 : index
    %9 = vector.load %arg6[%c0_10, %c0_11] : memref<1x128xf32, #tpu.memory_space<vmem>>, vector<1x128xf32>
    %10 = vector.broadcast %9 : vector<1x128xf32> to vector<8x128xf32>
    %11 = arith.addf %8, %10 : vector<8x128xf32>
    %cst_12 = arith.constant 0.000000e+00 : f32
    %12 = vector.broadcast %cst_12 : f32 to vector<8x128xf32>
    %13 = arith.maximumf %5, %12 : vector<8x128xf32>
    %cst_13 = arith.constant 0.000000e+00 : f32
    %14 = vector.broadcast %cst_13 : f32 to vector<8x128xf32>
    %15 = arith.maximumf %11, %14 : vector<8x128xf32>
    %16 = arith.mulf %13, %15 : vector<8x128xf32>
    %c0_14 = arith.constant 0 : index
    %c0_15 = arith.constant 0 : index
    %17 = vector.load %arg7[%c0_14, %c0_15] : memref<128x128xf32, #tpu.memory_space<vmem>>, vector<128x128xf32>
    %cst_16 = arith.constant dense<0.000000e+00> : vector<8x128xf32>
    %18 = tpu.matmul %16, %17, %cst_16 {dimension_numbers = #tpu.dot_dimension_numbers<[1], [0], [0], [1], [0, 0, 1, 1], [], []>} : vector<8x128xf32>, vector<128x128xf32>, vector<8x128xf32> -> vector<8x128xf32>
    %c0_17 = arith.constant 0 : index
    %c0_18 = arith.constant 0 : index
    %19 = vector.load %arg8[%c0_17, %c0_18] : memref<1x128xf32, #tpu.memory_space<vmem>>, vector<1x128xf32>
    %20 = vector.broadcast %19 : vector<1x128xf32> to vector<8x128xf32>
    %21 = arith.addf %18, %20 : vector<8x128xf32>
    %cst_19 = arith.constant 0.000000e+00 : f32
    %22 = vector.broadcast %cst_19 : f32 to vector<8x128xf32>
    %23 = arith.maximumf %21, %22 : vector<8x128xf32>
    %c0_20 = arith.constant 0 : index
    %c0_21 = arith.constant 0 : index
    %24 = vector.load %arg9[%c0_20, %c0_21] : memref<8x128xf32, #tpu.memory_space<vmem>>, vector<8x128xf32>
    tpu.vector_store %arg9[%c0_20, %c0_21], %23 {strides = array<i32>} : memref<8x128xf32, #tpu.memory_space<vmem>>, vector<8x128xf32>,
    return
  }
  func.func @transform_0(%arg0: i32) -> (i32, i32) {
    %c0_i32 = arith.constant 0 : i32
    %c0_i32_0 = arith.constant 0 : i32
    return %arg0, %c0_i32 : i32, i32
  }
  func.func @transform_1(%arg0: i32) -> (i32, i32) {
    %c0_i32 = arith.constant 0 : i32
    %c0_i32_0 = arith.constant 0 : i32
    return %arg0, %c0_i32 : i32, i32
  }
  func.func @transform_2(%arg0: i32) -> (i32, i32) {
    %c0_i32 = arith.constant 0 : i32
    %c0_i32_0 = arith.constant 0 : i32
    %c0_i32_1 = arith.constant 0 : i32
    return %c0_i32, %c0_i32_0 : i32, i32
  }
  func.func @transform_3(%arg0: i32) -> (i32, i32) {
    %c0_i32 = arith.constant 0 : i32
    %c0_i32_0 = arith.constant 0 : i32
    %c0_i32_1 = arith.constant 0 : i32
    return %c0_i32, %c0_i32_0 : i32, i32
  }
  func.func @transform_4(%arg0: i32) -> (i32, i32) {
    %c0_i32 = arith.constant 0 : i32
    %c0_i32_0 = arith.constant 0 : i32
    %c0_i32_1 = arith.constant 0 : i32
    return %c0_i32, %c0_i32_0 : i32, i32
  }
  func.func @transform_5(%arg0: i32) -> (i32, i32) {
    %c0_i32 = arith.constant 0 : i32
    %c0_i32_0 = arith.constant 0 : i32
    %c0_i32_1 = arith.constant 0 : i32
    return %c0_i32, %c0_i32_0 : i32, i32
  }
  func.func @transform_6(%arg0: i32) -> (i32, i32) {
    %c0_i32 = arith.constant 0 : i32
    %c0_i32_0 = arith.constant 0 : i32
    %c0_i32_1 = arith.constant 0 : i32
    return %c0_i32, %c0_i32_0 : i32, i32
  }
  func.func @transform_7(%arg0: i32) -> (i32, i32) {
    %c0_i32 = arith.constant 0 : i32
    %c0_i32_0 = arith.constant 0 : i32
    %c0_i32_1 = arith.constant 0 : i32
    return %c0_i32, %c0_i32_0 : i32, i32
  }
  func.func @transform_8(%arg0: i32) -> (i32, i32) {
    %c0_i32 = arith.constant 0 : i32
    %c0_i32_0 = arith.constant 0 : i32
    return %arg0, %c0_i32 : i32, i32
  }
}

</mosaic_0001>

<llo_original>
// kernel: mlb_forward.1
$region0: #{mlb_forward.1}
  #allocation0 [shape = 'u32[]', space=smem, size = 0x4, offset = 0x4, fixed_abs, tag = 'smem constant byte address 0x4 - core index']
  #allocation1 [shape = 'u32[144,128]{1,0:T(1,128)}', space=vmem, size = 0x12000, scoped, tag = 'internal scratch']
  %s0 = inlined_call_operand.hbm [shape: f32[16,32], index: 0, kind: input, shape index: {}]
  %s1 = inlined_call_operand.hbm [shape: f32[16,48], index: 1, kind: input, shape index: {}]
  %s2 = inlined_call_operand.hbm [shape: f32[32,128], index: 2, kind: input, shape index: {}]
  %s3 = inlined_call_operand.vmem [shape: f32[1,128], index: 3, kind: input, shape index: {}]
  %s4 = inlined_call_operand.hbm [shape: f32[48,128], index: 4, kind: input, shape index: {}]
  %s5 = inlined_call_operand.vmem [shape: f32[1,128], index: 5, kind: input, shape index: {}]
  %s6 = inlined_call_operand.hbm [shape: f32[128,128], index: 6, kind: input, shape index: {}]
  %s7 = inlined_call_operand.vmem [shape: f32[1,128], index: 7, kind: input, shape index: {}]
  %s8 = inlined_call_operand.hbm [shape: f32[16,128], index: 8, kind: output, shape index: {}]
  %s9 = sld [smem:[#allocation0]]
  $region85: #{mlb_forward.1} parent=0
    _
  %s11 = ssub.s32 1, %s9
  %s12 = scalar_select 0, %s11, %s9
  $region1: #{mlb_forward.1} parent=0
    #allocation2 [shape = 'u8[8192]{0}', space=vmem, size = 0x2000, scoped, tag = 'input window, operand 0']
    #allocation3 [shape = 's32[2]{0}', space=sflag, size = 0x8, scoped, tag = 'scoped memory for mlb_forward.1']
    #allocation4 [shape = 's32[2]{0}', space=sflag, size = 0x8, scoped, tag = 'scoped memory for mlb_forward.1']
    #allocation5 [shape = 'u8[8192]{0}', space=vmem, size = 0x2000, scoped, tag = 'input window, operand 1']
    #allocation6 [shape = 's32[2]{0}', space=sflag, size = 0x8, scoped, tag = 'scoped memory for mlb_forward.1']
    #allocation7 [shape = 'u8[16384]{0}', space=vmem, size = 0x4000, scoped, tag = 'input window, operand 2, single buffered']
    #allocation8 [shape = 'u8[24576]{0}', space=vmem, size = 0x6000, scoped, tag = 'input window, operand 4, single buffered']
    #allocation9 [shape = 's32[1]{0}', space=sflag, size = 0x4, scoped, tag = 'scoped memory for mlb_forward.1']
    #allocation10 [shape = 'u8[65536]{0}', space=vmem, size = 0x10000, scoped, tag = 'input window, operand 6, single buffered']
    #allocation11 [shape = 'u8[8192]{0}', space=vmem, size = 0x2000, scoped, tag = 'output window, operand 0']
    %13 = vsyncpa [#allocation3], 0
    %s14 = scalar_lea.sflag [#allocation3], 1
    %15 = vsyncpa %s14, 0
    %16 = vsyncpa [#allocation6], 0
    %s17 = scalar_lea.sflag [#allocation6], 1
    %18 = vsyncpa %s17, 0
    %19 = vsyncpa [#allocation9], 0
    %20 = vsyncpa [#allocation4], 0
    %s21 = scalar_lea.sflag [#allocation4], 1
    %22 = vsyncpa %s21, 0
    loop: start=0, step=1, limit=4
    $region2: #{mlb_forward.1} parent=1 // loop_pre_header
      _
    $region3: #{mlb_forward.1} parent=1 // loop_header
      %s24 = sphi 0, %s28
      %p25 = scmp.ge.s32.totalorder %s24, 4
      %s34 = sphi 0, %s36
      %s37 = sphi 0, %s34
      %s38 = sphi 0, %s37
      %s54 = sphi 0, %s38
      %s60 = sphi 0, %s62
      %s63 = sphi 0, %s60
      %s64 = sphi 0, %s63
      %s80 = sphi 0, %s64
      %s84 = sphi 0, %s84
      %s86 = sphi 0, %s84
      %s87 = sphi 0, %s86
      %s101 = sphi 0, %s87
      %s105 = sphi 0, %s105
      %s107 = sphi 0, %s105
      %s108 = sphi 0, %s107
      %s122 = sphi 0, %s108
      %s126 = sphi 0, %s126
      %s128 = sphi 0, %s126
      %s129 = sphi 0, %s128
      %s143 = sphi 0, %s129
      %s147 = sphi 0, %s147
      %s149 = sphi 0, %s147
      %s150 = sphi 0, %s149
      %s164 = sphi 0, %s150
      %s168 = sphi 0, %s168
      %s170 = sphi 0, %s168
      %s171 = sphi 0, %s170
      %s185 = sphi 0, %s171
      %s189 = sphi 0, %s189
      %s191 = sphi 0, %s189
      %s192 = sphi 0, %s191
      %s206 = sphi 0, %s192
      %s212 = sphi 0, %s214
      %s215 = sphi 0, %s212
      %s216 = sphi 0, %s215
      %s232 = sphi 0, %s216
    $region4: #{mlb_forward.1} parent=1 // loop_header_branch
      %27 = sbr.rel (%p25) target = $region8
    $region5: #{mlb_forward.1} parent=1 // loop_body
      %s29 = ssub.s32 %s24, 1
      %s30 = ssub.s32 %s24, 2
      %s31 = sadd.s32 %s24, 1
      %s32 = ssub.s32 %s24, %s31
      %p33 = scmp.eq.s32.totalorder %s32, 0
      %s35 = sadd.s32 %s34, 1
      %s36 = scalar_select %p33, %s34, %s35
      %p39 = pneg %p33
      %p40 = scmp.eq.s32.totalorder %s24, 1
      %p41 = por %p39, %p40
      %p42 = scmp.ne.s32.totalorder %s34, %s37
      %p43 = scmp.eq.s32.totalorder %s24, 0
      %p44 = por %p42, %p43
      %p45 = scmp.ne.s32.totalorder %s34, %s37
      %p46 = scmp.eq.s32.totalorder %s29, 1
      %p47 = por %p45, %p46
      %p48 = scmp.ne.s32.totalorder %s37, %s38
      %p49 = scmp.eq.s32.totalorder %s29, 0
      %p50 = por %p48, %p49
      %p51 = scmp.ne.s32.totalorder %s37, %s38
      %p52 = scmp.eq.s32.totalorder %s30, 1
      %p53 = por %p51, %p52
      %p55 = scmp.ne.s32.totalorder %s38, %s54
      %p56 = scmp.eq.s32.totalorder %s30, 0
      %p57 = por %p55, %p56
      %s58 = ssub.s32 %s24, %s31
      %p59 = scmp.eq.s32.totalorder %s58, 0
      %s61 = sadd.s32 %s60, 1
      %s62 = scalar_select %p59, %s60, %s61
      %p65 = pneg %p59
      %p66 = scmp.eq.s32.totalorder %s24, 1
      %p67 = por %p65, %p66
      %p68 = scmp.ne.s32.totalorder %s60, %s63
      %p69 = scmp.eq.s32.totalorder %s24, 0
      %p70 = por %p68, %p69
      %p71 = scmp.ne.s32.totalorder %s60, %s63
      %p72 = scmp.eq.s32.totalorder %s29, 1
      %p73 = por %p71, %p72
      %p74 = scmp.ne.s32.totalorder %s63, %s64
      %p75 = scmp.eq.s32.totalorder %s29, 0
      %p76 = por %p74, %p75
      %p77 = scmp.ne.s32.totalorder %s63, %s64
      %p78 = scmp.eq.s32.totalorder %s30, 1
      %p79 = por %p77, %p78
      %p81 = scmp.ne.s32.totalorder %s64, %s80
      %p82 = scmp.eq.s32.totalorder %s30, 0
      %p83 = por %p81, %p82
      %s85 = sadd.s32 %s84, 1
      %p88 = scmp.eq.s32.totalorder %s24, 1
      %p89 = scmp.ne.s32.totalorder %s84, %s86
      %p90 = scmp.eq.s32.totalorder %s24, 0
      %p91 = por %p89, %p90
      %p92 = scmp.ne.s32.totalorder %s84, %s86
      %p93 = scmp.eq.s32.totalorder %s29, 1
      %p94 = por %p92, %p93
      %p95 = scmp.ne.s32.totalorder %s86, %s87
      %p96 = scmp.eq.s32.totalorder %s29, 0
      %p97 = por %p95, %p96
      %p98 = scmp.ne.s32.totalorder %s86, %s87
      %p99 = scmp.eq.s32.totalorder %s30, 1
      %p100 = por %p98, %p99
      %p102 = scmp.ne.s32.totalorder %s87, %s101
      %p103 = scmp.eq.s32.totalorder %s30, 0
      %p104 = por %p102, %p103
      %s106 = sadd.s32 %s105, 1
      %p109 = scmp.eq.s32.totalorder %s24, 1
      %p110 = scmp.ne.s32.totalorder %s105, %s107
      %p111 = scmp.eq.s32.totalorder %s24, 0
      %p112 = por %p110, %p111
      %p113 = scmp.ne.s32.totalorder %s105, %s107
      %p114 = scmp.eq.s32.totalorder %s29, 1
      %p115 = por %p113, %p114
      %p116 = scmp.ne.s32.totalorder %s107, %s108
      %p117 = scmp.eq.s32.totalorder %s29, 0
      %p118 = por %p116, %p117
      %p119 = scmp.ne.s32.totalorder %s107, %s108
      %p120 = scmp.eq.s32.totalorder %s30, 1
      %p121 = por %p119, %p120
      %p123 = scmp.ne.s32.totalorder %s108, %s122
      %p124 = scmp.eq.s32.totalorder %s30, 0
      %p125 = por %p123, %p124
      %s127 = sadd.s32 %s126, 1
      %p130 = scmp.eq.s32.totalorder %s24, 1
      %p131 = scmp.ne.s32.totalorder %s126, %s128
      %p132 = scmp.eq.s32.totalorder %s24, 0
      %p133 = por %p131, %p132
      %p134 = scmp.ne.s32.totalorder %s126, %s128
      %p135 = scmp.eq.s32.totalorder %s29, 1
      %p136 = por %p134, %p135
      %p137 = scmp.ne.s32.totalorder %s128, %s129
      %p138 = scmp.eq.s32.totalorder %s29, 0
      %p139 = por %p137, %p138
      %p140 = scmp.ne.s32.totalorder %s128, %s129
      %p141 = scmp.eq.s32.totalorder %s30, 1
      %p142 = por %p140, %p141
      %p144 = scmp.ne.s32.totalorder %s129, %s143
      %p145 = scmp.eq.s32.totalorder %s30, 0
      %p146 = por %p144, %p145
      %s148 = sadd.s32 %s147, 1
      %p151 = scmp.eq.s32.totalorder %s24, 1
      %p152 = scmp.ne.s32.totalorder %s147, %s149
      %p153 = scmp.eq.s32.totalorder %s24, 0
      %p154 = por %p152, %p153
      %p155 = scmp.ne.s32.totalorder %s147, %s149
      %p156 = scmp.eq.s32.totalorder %s29, 1
      %p157 = por %p155, %p156
      %p158 = scmp.ne.s32.totalorder %s149, %s150
      %p159 = scmp.eq.s32.totalorder %s29, 0
      %p160 = por %p158, %p159
      %p161 = scmp.ne.s32.totalorder %s149, %s150
      %p162 = scmp.eq.s32.totalorder %s30, 1
      %p163 = por %p161, %p162
      %p165 = scmp.ne.s32.totalorder %s150, %s164
      %p166 = scmp.eq.s32.totalorder %s30, 0
      %p167 = por %p165, %p166
      %s169 = sadd.s32 %s168, 1
      %p172 = scmp.eq.s32.totalorder %s24, 1
      %p173 = scmp.ne.s32.totalorder %s168, %s170
      %p174 = scmp.eq.s32.totalorder %s24, 0
      %p175 = por %p173, %p174
      %p176 = scmp.ne.s32.totalorder %s168, %s170
      %p177 = scmp.eq.s32.totalorder %s29, 1
      %p178 = por %p176, %p177
      %p179 = scmp.ne.s32.totalorder %s170, %s171
      %p180 = scmp.eq.s32.totalorder %s29, 0
      %p181 = por %p179, %p180
      %p182 = scmp.ne.s32.totalorder %s170, %s171
      %p183 = scmp.eq.s32.totalorder %s30, 1
      %p184 = por %p182, %p183
      %p186 = scmp.ne.s32.totalorder %s171, %s185
      %p187 = scmp.eq.s32.totalorder %s30, 0
      %p188 = por %p186, %p187
      %s190 = sadd.s32 %s189, 1
      %p193 = scmp.eq.s32.totalorder %s24, 1
      %p194 = scmp.ne.s32.totalorder %s189, %s191
      %p195 = scmp.eq.s32.totalorder %s24, 0
      %p196 = por %p194, %p195
      %p197 = scmp.ne.s32.totalorder %s189, %s191
      %p198 = scmp.eq.s32.totalorder %s29, 1
      %p199 = por %p197, %p198
      %p200 = scmp.ne.s32.totalorder %s191, %s192
      %p201 = scmp.eq.s32.totalorder %s29, 0
      %p202 = por %p200, %p201
      %p203 = scmp.ne.s32.totalorder %s191, %s192
      %p204 = scmp.eq.s32.totalorder %s30, 1
      %p205 = por %p203, %p204
      %p207 = scmp.ne.s32.totalorder %s192, %s206
      %p208 = scmp.eq.s32.totalorder %s30, 0
      %p209 = por %p207, %p208
      %s210 = ssub.s32 %s24, %s31
      %p211 = scmp.eq.s32.totalorder %s210, 0
      %s213 = sadd.s32 %s212, 1
      %s214 = scalar_select %p211, %s212, %s213
      %p217 = pneg %p211
      %p218 = scmp.eq.s32.totalorder %s24, 1
      %p219 = por %p217, %p218
      %p220 = scmp.ne.s32.totalorder %s212, %s215
      %p221 = scmp.eq.s32.totalorder %s24, 0
      %p222 = por %p220, %p221
      %p223 = scmp.ne.s32.totalorder %s212, %s215
      %p224 = scmp.eq.s32.totalorder %s29, 1
      %p225 = por %p223, %p224
      %p226 = scmp.ne.s32.totalorder %s215, %s216
      %p227 = scmp.eq.s32.totalorder %s29, 0
      %p228 = por %p226, %p227
      %p229 = scmp.ne.s32.totalorder %s215, %s216
      %p230 = scmp.eq.s32.totalorder %s30, 1
      %p231 = por %p229, %p230
      %p233 = scmp.ne.s32.totalorder %s216, %s232
      %p234 = scmp.eq.s32.totalorder %s30, 0
      %p235 = por %p233, %p234
      %p236 = scmp.le.s32.totalorder 1, %s24
      %p237 = scmp.lt.s32.totalorder %s24, 3
      %p238 = pnand %p236, %p237
      %p239 = pneg %p238
      // Predicated region
      $region9: #{mlb_forward.1} parent=5 // pred_check
        _
      $region10: #{mlb_forward.1} parent=5 // pred_check_branch
        %241 = sbr.rel (%p238) target = $region12
      $region11: #{mlb_forward.1} parent=5 // pred_region
        %s242 = ssub.s32 %s24, 1
        // Predicated region
        $region13: #{mlb_forward.1} parent=11 // pred_check
          %p243 = pneg %p97
        $region14: #{mlb_forward.1} parent=11 // pred_check_branch
          %245 = sbr.rel (%p243) target = $region16
        $region15: #{mlb_forward.1} parent=11 // pred_region
          %s247 = ssub.s32 512, 512
          %248 = vsyncadd [#allocation6], %s247
          %s249 = sshll.u32 [#allocation7], 4
          %s250 = int_to_ptr.vmem [resolvable:$true] %s249
          %255 = dma.hbm_to_vmem [thread:$0]  %s2, 512, %s250, [#allocation6], 128, 128, 8
        $region16: #{mlb_forward.1} parent=11 // pred_fallthru
          _
        // Predicated region
        $region17: #{mlb_forward.1} parent=11 // pred_check
          %p256 = pneg %p118
        $region18: #{mlb_forward.1} parent=11 // pred_check_branch
          %258 = sbr.rel (%p256) target = $region20
        $region19: #{mlb_forward.1} parent=11 // pred_region
          _
        $region20: #{mlb_forward.1} parent=11 // pred_fallthru
          _
        // Predicated region
        $region21: #{mlb_forward.1} parent=11 // pred_check
          %p259 = pneg %p139
        $region22: #{mlb_forward.1} parent=11 // pred_check_branch
          %261 = sbr.rel (%p259) target = $region24
        $region23: #{mlb_forward.1} parent=11 // pred_region
          %s263 = ssub.s32 768, 768
          %264 = vsyncadd [#allocation9], %s263
          %s265 = sshll.u32 [#allocation8], 4
          %s266 = int_to_ptr.vmem [resolvable:$true] %s265
          %271 = dma.hbm_to_vmem [thread:$0]  %s4, 768, %s266, [#allocation9], 128, 128, 8
        $region24: #{mlb_forward.1} parent=11 // pred_fallthru
          _
        // Predicated region
        $region25: #{mlb_forward.1} parent=11 // pred_check
          %p272 = pneg %p160
        $region26: #{mlb_forward.1} parent=11 // pred_check_branch
          %274 = sbr.rel (%p272) target = $region28
        $region27: #{mlb_forward.1} parent=11 // pred_region
          _
        $region28: #{mlb_forward.1} parent=11 // pred_fallthru
          _
        // Predicated region
        $region29: #{mlb_forward.1} parent=11 // pred_check
          %p275 = pneg %p181
        $region30: #{mlb_forward.1} parent=11 // pred_check_branch
          %277 = sbr.rel (%p275) target = $region32
        $region31: #{mlb_forward.1} parent=11 // pred_region
          %s279 = ssub.s32 2048, 2048
          %280 = vsyncadd [#allocation9], %s279
          %s281 = sshll.u32 [#allocation10], 4
          %s282 = int_to_ptr.vmem [resolvable:$true] %s281
          %287 = dma.hbm_to_vmem [thread:$0]  %s6, 2048, %s282, [#allocation9], 128, 128, 8
        $region32: #{mlb_forward.1} parent=11 // pred_fallthru
          _
        // Predicated region
        $region33: #{mlb_forward.1} parent=11 // pred_check
          %p288 = pneg %p202
        $region34: #{mlb_forward.1} parent=11 // pred_check_branch
          %290 = sbr.rel (%p288) target = $region36
        $region35: #{mlb_forward.1} parent=11 // pred_region
          _
        $region36: #{mlb_forward.1} parent=11 // pred_fallthru
          _
      $region12: #{mlb_forward.1} parent=5 // pred_fallthru
        _
      %p291 = scmp.lt.s32.totalorder %s24, 2
      // Predicated region
      $region37: #{mlb_forward.1} parent=5 // pred_check
        %p292 = pneg %p291
      $region38: #{mlb_forward.1} parent=5 // pred_check_branch
        %294 = sbr.rel (%p292) target = $region40
      $region39: #{mlb_forward.1} parent=5 // pred_region
        // Predicated region
        $region41: #{mlb_forward.1} parent=39 // pred_check
          %p295 = pneg %p44
        $region42: #{mlb_forward.1} parent=39 // pred_check_branch
          %297 = sbr.rel (%p295) target = $region44
        $region43: #{mlb_forward.1} parent=39 // pred_region
          %s298 = sand.u32 %s34, 1
          %s299 = scalar_lea.sflag [#allocation3], %s298
          %s300 = sand.u32 %s34, 1
          %s301 = smul.addr %s300, 8
          %s302 = scalar_lea.vmem [#allocation2], %s301
          %s304 = ssub.s32 128, 128
          %305 = vsyncadd %s299, %s304
          %s306 = smul.addr %s24, 128
          %s307 = scalar_lea.hbm %s0, %s306
          %s309 = sshll.u32 %s302, 4
          %s310 = int_to_ptr.vmem [resolvable:$true] %s309
          %312 = dma.hbm_to_vmem [thread:$0]  %s307, 128, %s310, %s299
        $region44: #{mlb_forward.1} parent=39 // pred_fallthru
          _
        // Predicated region
        $region45: #{mlb_forward.1} parent=39 // pred_check
          %p313 = pneg %p70
        $region46: #{mlb_forward.1} parent=39 // pred_check_branch
          %315 = sbr.rel (%p313) target = $region48
        $region47: #{mlb_forward.1} parent=39 // pred_region
          %s316 = sand.u32 %s24, 1
          %s317 = scalar_lea.sflag [#allocation6], %s316
          %s318 = sand.u32 %s60, 1
          %s319 = smul.addr %s318, 8
          %s320 = scalar_lea.vmem [#allocation5], %s319
          %s322 = ssub.s32 128, 128
          %323 = vsyncadd %s317, %s322
          %s324 = smul.addr %s24, 128
          %s325 = scalar_lea.hbm %s1, %s324
          %s327 = sshll.u32 %s320, 4
          %s328 = int_to_ptr.vmem [resolvable:$true] %s327
          %330 = dma.hbm_to_vmem [thread:$0]  %s325, 128, %s328, %s317
        $region48: #{mlb_forward.1} parent=39 // pred_fallthru
          _
      $region40: #{mlb_forward.1} parent=5 // pred_fallthru
        _
      %p331 = scmp.le.s32.totalorder 1, %s24
      %p332 = scmp.lt.s32.totalorder %s24, 3
      %p333 = pnand %p331, %p332
      %p334 = pneg %p333
      // Predicated region
      $region49: #{mlb_forward.1} parent=5 // pred_check
        _
      $region50: #{mlb_forward.1} parent=5 // pred_check_branch
        %336 = sbr.rel (%p333) target = $region52
      $region51: #{mlb_forward.1} parent=5 // pred_region
        %s337 = ssub.s32 %s24, 1
        %s338 = sand.u32 %s37, 1
        %s339 = scalar_lea.sflag [#allocation3], %s338
        %s340 = sand.u32 %s37, 1
        %s341 = smul.addr %s340, 8
        %s342 = scalar_lea.vmem [#allocation2], %s341
        // Predicated region
        $region53: #{mlb_forward.1} parent=51 // pred_check
          %p343 = pneg %p50
        $region54: #{mlb_forward.1} parent=51 // pred_check_branch
          %345 = sbr.rel (%p343) target = $region56
        $region55: #{mlb_forward.1} parent=51 // pred_region
          %346 = dma.done %s339, 128
        $region56: #{mlb_forward.1} parent=51 // pred_fallthru
          _
        %s347 = sand.u32 %s29, 1
        %s348 = scalar_lea.sflag [#allocation6], %s347
        %s349 = sand.u32 %s63, 1
        %s350 = smul.addr %s349, 8
        %s351 = scalar_lea.vmem [#allocation5], %s350
        // Predicated region
        $region57: #{mlb_forward.1} parent=51 // pred_check
          %p352 = pneg %p76
        $region58: #{mlb_forward.1} parent=51 // pred_check_branch
          %354 = sbr.rel (%p352) target = $region60
        $region59: #{mlb_forward.1} parent=51 // pred_region
          %355 = dma.done %s348, 128
        $region60: #{mlb_forward.1} parent=51 // pred_fallthru
          _
        // Predicated region
        $region61: #{mlb_forward.1} parent=51 // pred_check
          %p356 = pneg %p97
        $region62: #{mlb_forward.1} parent=51 // pred_check_branch
          %358 = sbr.rel (%p356) target = $region64
        $region63: #{mlb_forward.1} parent=51 // pred_region
          %359 = dma.done [#allocation6], 512
        $region64: #{mlb_forward.1} parent=51 // pred_fallthru
          _
        // Predicated region
        $region65: #{mlb_forward.1} parent=51 // pred_check
          %p360 = pneg %p139
        $region66: #{mlb_forward.1} parent=51 // pred_check_branch
          %362 = sbr.rel (%p360) target = $region68
        $region67: #{mlb_forward.1} parent=51 // pred_region
          %363 = dma.done [#allocation9], 768
        $region68: #{mlb_forward.1} parent=51 // pred_fallthru
          _
        // Predicated region
        $region69: #{mlb_forward.1} parent=51 // pred_check
          %p364 = pneg %p181
        $region70: #{mlb_forward.1} parent=51 // pred_check_branch
          %366 = sbr.rel (%p364) target = $region72
        $region71: #{mlb_forward.1} parent=51 // pred_region
          %367 = dma.done [#allocation9], 2048
        $region72: #{mlb_forward.1} parent=51 // pred_fallthru
          _
        %s368 = sand.u32 %s37, 1
        %s369 = scalar_lea.sflag [#allocation3], %s368
        %s370 = sand.u32 %s37, 1
        %s371 = smul.addr %s370, 8
        %s372 = scalar_lea.vmem [#allocation2], %s371
        %p373 = pneg %p50
        %p374 = pneg %p47
        %s375 = sand.u32 %s29, 1
        %s376 = scalar_lea.sflag [#allocation6], %s375
        %s377 = sand.u32 %s63, 1
        %s378 = smul.addr %s377, 8
        %s379 = scalar_lea.vmem [#allocation5], %s378
        %p380 = pneg %p76
        %p381 = pneg %p73
        %p382 = pneg %p97
        %p383 = pneg %p94
        %p384 = pneg %p118
        %p385 = pneg %p115
        %p386 = pneg %p139
        %p387 = pneg %p136
        %p388 = pneg %p160
        %p389 = pneg %p157
        %p390 = pneg %p181
        %p391 = pneg %p178
        %p392 = pneg %p202
        %p393 = pneg %p199
        %p394 = pneg %p228
        %p395 = pneg %p225
        %s396 = sand.u32 %s215, 1
        %s397 = scalar_lea.sflag [#allocation4], %s396
        %s398 = sand.u32 %s215, 1
        %s399 = smul.addr %s398, 8
        %s400 = scalar_lea.vmem [#allocation11], %s399
        %v401 = vld [vmem:[%s342] sm:$0xff]
        %v402 = vld [vmem:[#allocation7] sm:$0xff]
        %v403 = vld [vmem:[#allocation7 + $0x8] sm:$0xff]
        %v404 = vld [vmem:[#allocation7 + $0x10] sm:$0xff]
        %v405 = vld [vmem:[#allocation7 + $0x18] sm:$0xff]
        %v406 = vld [vmem:[%s3] sm:$0x1]
        %v408 = vlaneseq
        %v409 = vshrl.u32 %v408, 7
        %v410 = vsub.s32 0, %v409
        %v411 = vrot.slane %v406, %v410
        %vm413 = vcmask 261120
        %v415 = vsel %vm413, %v401, 0
        %417 = vmatprep.subr.mxu0 0.0
        %418 = vmatpush1.msra.mxu0 %v402
        %419 = vmatprep.subr.mxu0 0.0
        %420 = vmatpush1.msra.mxu0 %v403
        %421 = vmatprep.subr.mxu0 0.0
        %422 = vmatpush1.msra.mxu0 %v404
        %423 = vmatprep.subr.mxu0 0.0
        %424 = vmatpush1.msra.mxu0 %v405
        %425 = vmatprep.subr.mxu0 0.0
        %426 = vmatpush1.msra.mxu0 0.0
        %427 = vmatprep.subr.mxu0 0.0
        %428 = vmatpush1.msra.mxu0 0.0
        %429 = vmatprep.subr.mxu0 0.0
        %430 = vmatpush1.msra.mxu0 0.0
        %431 = vmatprep.subr.mxu0 0.0
        %432 = vmatpush1.msra.mxu0 0.0
        %433 = vmatprep.subr.mxu0 0.0
        %434 = vmatpush1.msra.mxu0 0.0
        %435 = vmatprep.subr.mxu0 0.0
        %436 = vmatpush1.msra.mxu0 0.0
        %437 = vmatprep.subr.mxu0 0.0
        %438 = vmatpush1.msra.mxu0 0.0
        %439 = vmatprep.subr.mxu0 0.0
        %440 = vmatpush1.msra.mxu0 0.0
        %441 = vmatprep.subr.mxu0 0.0
        %442 = vmatpush1.msra.mxu0 0.0
        %443 = vmatprep.subr.mxu0 0.0
        %444 = vmatpush1.msra.mxu0 0.0
        %445 = vmatprep.subr.mxu0 0.0
        %446 = vmatpush1.msra.mxu0 0.0
        %447 = vmatprep.subr.mxu0 0.0
        %448 = vmatpush1.msra.mxu0 0.0
        %449 = vmatprep.subr.mxu0 0.0
        %450 = vmatpush1.msra.mxu0 0.0
        %451 = vmatprep.subr.mxu0 0.0
        %452 = vmatpush1.msra.mxu0 0.0
        %453 = vmatprep.subr.mxu0 0.0
        %454 = vmatpush1.msra.mxu0 0.0
        %455 = vmatprep.subr.mxu0 0.0
        %456 = vmatpush1.msra.mxu0 0.0
        %457 = vmatprep.subr.mxu0 0.0
        %458 = vmatpush1.msra.mxu0 0.0
        %459 = vmatprep.subr.mxu0 0.0
        %460 = vmatpush1.msra.mxu0 0.0
        %461 = vmatprep.subr.mxu0 0.0
        %462 = vmatpush1.msra.mxu0 0.0
        %463 = vmatprep.subr.mxu0 0.0
        %464 = vmatpush1.msra.mxu0 0.0
        %465 = vmatprep.subr.mxu0 0.0
        %466 = vmatpush1.msra.mxu0 0.0
        %467 = vmatprep.subr.mxu0 0.0
        %468 = vmatpush1.msra.mxu0 0.0
        %469 = vmatprep.subr.mxu0 0.0
        %470 = vmatpush1.msra.mxu0 0.0
        %471 = vmatprep.subr.mxu0 0.0
        %472 = vmatpush1.msra.mxu0 0.0
        %473 = vmatprep.subr.mxu0 0.0
        %474 = vmatpush1.msra.mxu0 0.0
        %475 = vmatprep.subr.mxu0 0.0
        %476 = vmatpush1.msra.mxu0 0.0
        %477 = vmatprep.subr.mxu0 0.0
        %478 = vmatpush1.msra.mxu0 0.0
        %479 = vmatprep.subr.mxu0 0.0
        %480 = vmatpush1.msra.mxu0 0.0
        %481 = vmatprep.mubr.f32.mxu0 0.0
        %482 = vmatmul.mubr.f32.gmra.mrb[0].mxu0 %v415
        %v483 = vpop.f32.mrb[0].mxu0
        %v484 = vadd.f32 %v411, %v483
        %v485 = vpop.f32.mrb[0].mxu0
        %486 = vdwg.mxu0
        %v487 = vld [vmem:[%s351] sm:$0xff]
        %v488 = vld [vmem:[#allocation8] sm:$0xff]
        %v489 = vld [vmem:[#allocation8 + $0x8] sm:$0xff]
        %v490 = vld [vmem:[#allocation8 + $0x10] sm:$0xff]
        %v491 = vld [vmem:[#allocation8 + $0x18] sm:$0xff]
        %v492 = vld [vmem:[#allocation8 + $0x20] sm:$0xff]
        %v493 = vld [vmem:[#allocation8 + $0x28] sm:$0xff]
        %v494 = vld [vmem:[%s5] sm:$0x1]
        %v496 = vlaneseq
        %v497 = vshrl.u32 %v496, 7
        %v498 = vsub.s32 0, %v497
        %v499 = vrot.slane %v494, %v498
        %vm501 = vcmask 392192
        %v503 = vsel %vm501, %v487, 0
        %505 = vmatprep.subr.mxu0 0.0
        %506 = vmatpush1.msra.mxu0 %v488
        %507 = vmatprep.subr.mxu0 0.0
        %508 = vmatpush1.msra.mxu0 %v489
        %509 = vmatprep.subr.mxu0 0.0
        %510 = vmatpush1.msra.mxu0 %v490
        %511 = vmatprep.subr.mxu0 0.0
        %512 = vmatpush1.msra.mxu0 %v491
        %513 = vmatprep.subr.mxu0 0.0
        %514 = vmatpush1.msra.mxu0 %v492
        %515 = vmatprep.subr.mxu0 0.0
        %516 = vmatpush1.msra.mxu0 %v493
        %517 = vmatprep.subr.mxu0 0.0
        %518 = vmatpush1.msra.mxu0 0.0
        %519 = vmatprep.subr.mxu0 0.0
        %520 = vmatpush1.msra.mxu0 0.0
        %521 = vmatprep.subr.mxu0 0.0
        %522 = vmatpush1.msra.mxu0 0.0
        %523 = vmatprep.subr.mxu0 0.0
        %524 = vmatpush1.msra.mxu0 0.0
        %525 = vmatprep.subr.mxu0 0.0
        %526 = vmatpush1.msra.mxu0 0.0
        %527 = vmatprep.subr.mxu0 0.0
        %528 = vmatpush1.msra.mxu0 0.0
        %529 = vmatprep.subr.mxu0 0.0
        %530 = vmatpush1.msra.mxu0 0.0
        %531 = vmatprep.subr.mxu0 0.0
        %532 = vmatpush1.msra.mxu0 0.0
        %533 = vmatprep.subr.mxu0 0.0
        %534 = vmatpush1.msra.mxu0 0.0
        %535 = vmatprep.subr.mxu0 0.0
        %536 = vmatpush1.msra.mxu0 0.0
        %537 = vmatprep.subr.mxu0 0.0
        %538 = vmatpush1.msra.mxu0 0.0
        %539 = vmatprep.subr.mxu0 0.0
        %540 = vmatpush1.msra.mxu0 0.0
        %541 = vmatprep.subr.mxu0 0.0
        %542 = vmatpush1.msra.mxu0 0.0
        %543 = vmatprep.subr.mxu0 0.0
        %544 = vmatpush1.msra.mxu0 0.0
        %545 = vmatprep.subr.mxu0 0.0
        %546 = vmatpush1.msra.mxu0 0.0
        %547 = vmatprep.subr.mxu0 0.0
        %548 = vmatpush1.msra.mxu0 0.0
        %549 = vmatprep.subr.mxu0 0.0
        %550 = vmatpush1.msra.mxu0 0.0
        %551 = vmatprep.subr.mxu0 0.0
        %552 = vmatpush1.msra.mxu0 0.0
        %553 = vmatprep.subr.mxu0 0.0
        %554 = vmatpush1.msra.mxu0 0.0
        %555 = vmatprep.subr.mxu0 0.0
        %556 = vmatpush1.msra.mxu0 0.0
        %557 = vmatprep.subr.mxu0 0.0
        %558 = vmatpush1.msra.mxu0 0.0
        %559 = vmatprep.subr.mxu0 0.0
        %560 = vmatpush1.msra.mxu0 0.0
        %561 = vmatprep.subr.mxu0 0.0
        %562 = vmatpush1.msra.mxu0 0.0
        %563 = vmatprep.subr.mxu0 0.0
        %564 = vmatpush1.msra.mxu0 0.0
        %565 = vmatprep.subr.mxu0 0.0
        %566 = vmatpush1.msra.mxu0 0.0
        %567 = vmatprep.subr.mxu0 0.0
        %568 = vmatpush1.msra.mxu0 0.0
        %569 = vmatprep.mubr.f32.mxu0 0.0
        %570 = vmatmul.mubr.f32.gmra.mrb[0].mxu0 %v503
        %v571 = vpop.f32.mrb[0].mxu0
        %v572 = vadd.f32 %v499, %v571
        %v573 = vpop.f32.mrb[0].mxu0
        %574 = vdwg.mxu0
        %v575 = vmax.f32 %v484, 0.0
        %v576 = vmax.f32 %v572, 0.0
        %v577 = vmul.f32 %v575, %v576
        %v578 = vld [vmem:[#allocation10] sm:$0xff]
        %v579 = vld [vmem:[#allocation10 + $0x8] sm:$0xff]
        %v580 = vld [vmem:[#allocation10 + $0x10] sm:$0xff]
        %v581 = vld [vmem:[#allocation10 + $0x18] sm:$0xff]
        %v582 = vld [vmem:[#allocation10 + $0x20] sm:$0xff]
        %v583 = vld [vmem:[#allocation10 + $0x28] sm:$0xff]
        %v584 = vld [vmem:[#allocation10 + $0x30] sm:$0xff]
        %v585 = vld [vmem:[#allocation10 + $0x38] sm:$0xff]
        %v586 = vld [vmem:[#allocation10 + $0x40] sm:$0xff]
        %v587 = vld [vmem:[#allocation10 + $0x48] sm:$0xff]
        %v588 = vld [vmem:[#allocation10 + $0x50] sm:$0xff]
        %v589 = vld [vmem:[#allocation10 + $0x58] sm:$0xff]
        %v590 = vld [vmem:[#allocation10 + $0x60] sm:$0xff]
        %v591 = vld [vmem:[#allocation10 + $0x68] sm:$0xff]
        %v592 = vld [vmem:[#allocation10 + $0x70] sm:$0xff]
        %v593 = vld [vmem:[#allocation10 + $0x78] sm:$0xff]
        %v594 = vld [vmem:[%s7] sm:$0x1]
        %v596 = vlaneseq
        %v597 = vshrl.u32 %v596, 7
        %v598 = vsub.s32 0, %v597
        %v599 = vrot.slane %v594, %v598
        %601 = vmatprep.subr.mxu0 0.0
        %602 = vmatpush1.msra.mxu0 %v578
        %603 = vmatprep.subr.mxu0 0.0
        %604 = vmatpush1.msra.mxu0 %v579
        %605 = vmatprep.subr.mxu0 0.0
        %606 = vmatpush1.msra.mxu0 %v580
        %607 = vmatprep.subr.mxu0 0.0
        %608 = vmatpush1.msra.mxu0 %v581
        %609 = vmatprep.subr.mxu0 0.0
        %610 = vmatpush1.msra.mxu0 %v582
        %611 = vmatprep.subr.mxu0 0.0
        %612 = vmatpush1.msra.mxu0 %v583
        %613 = vmatprep.subr.mxu0 0.0
        %614 = vmatpush1.msra.mxu0 %v584
        %615 = vmatprep.subr.mxu0 0.0
        %616 = vmatpush1.msra.mxu0 %v585
        %617 = vmatprep.subr.mxu0 0.0
        %618 = vmatpush1.msra.mxu0 %v586
        %619 = vmatprep.subr.mxu0 0.0
        %620 = vmatpush1.msra.mxu0 %v587
        %621 = vmatprep.subr.mxu0 0.0
        %622 = vmatpush1.msra.mxu0 %v588
        %623 = vmatprep.subr.mxu0 0.0
        %624 = vmatpush1.msra.mxu0 %v589
        %625 = vmatprep.subr.mxu0 0.0
        %626 = vmatpush1.msra.mxu0 %v590
        %627 = vmatprep.subr.mxu0 0.0
        %628 = vmatpush1.msra.mxu0 %v591
        %629 = vmatprep.subr.mxu0 0.0
        %630 = vmatpush1.msra.mxu0 %v592
        %631 = vmatprep.subr.mxu0 0.0
        %632 = vmatpush1.msra.mxu0 %v593
        %633 = vmatprep.subr.mxu0 0.0
        %634 = vmatpush1.msra.mxu0 0.0
        %635 = vmatprep.subr.mxu0 0.0
        %636 = vmatpush1.msra.mxu0 0.0
        %637 = vmatprep.subr.mxu0 0.0
        %638 = vmatpush1.msra.mxu0 0.0
        %639 = vmatprep.subr.mxu0 0.0
        %640 = vmatpush1.msra.mxu0 0.0
        %641 = vmatprep.subr.mxu0 0.0
        %642 = vmatpush1.msra.mxu0 0.0
        %643 = vmatprep.subr.mxu0 0.0
        %644 = vmatpush1.msra.mxu0 0.0
        %645 = vmatprep.subr.mxu0 0.0
        %646 = vmatpush1.msra.mxu0 0.0
        %647 = vmatprep.subr.mxu0 0.0
        %648 = vmatpush1.msra.mxu0 0.0
        %649 = vmatprep.subr.mxu0 0.0
        %650 = vmatpush1.msra.mxu0 0.0
        %651 = vmatprep.subr.mxu0 0.0
        %652 = vmatpush1.msra.mxu0 0.0
        %653 = vmatprep.subr.mxu0 0.0
        %654 = vmatpush1.msra.mxu0 0.0
        %655 = vmatprep.subr.mxu0 0.0
        %656 = vmatpush1.msra.mxu0 0.0
        %657 = vmatprep.subr.mxu0 0.0
        %658 = vmatpush1.msra.mxu0 0.0
        %659 = vmatprep.subr.mxu0 0.0
        %660 = vmatpush1.msra.mxu0 0.0
        %661 = vmatprep.subr.mxu0 0.0
        %662 = vmatpush1.msra.mxu0 0.0
        %663 = vmatprep.subr.mxu0 0.0
        %664 = vmatpush1.msra.mxu0 0.0
        %665 = vmatprep.mubr.f32.mxu0 0.0
        %666 = vmatmul.mubr.f32.gmra.mrb[0].mxu0 %v577
        %v667 = vpop.f32.mrb[0].mxu0
        %v668 = vadd.f32 %v599, %v667
        %v669 = vpop.f32.mrb[0].mxu0
        %670 = vdwg.mxu0
        %v671 = vmax.f32 %v668, 0.0
        %672 = vst [vmem:[%s400] sm:$0xff] %v671
        %s673 = sand.u32 %s215, 1
        %s674 = scalar_lea.sflag [#allocation4], %s673
        %s675 = sand.u32 %s215, 1
        %s676 = smul.addr %s675, 8
        %s677 = scalar_lea.vmem [#allocation11], %s676
        // Predicated region
        $region73: #{mlb_forward.1} parent=51 // pred_check
          %p678 = pneg %p225
        $region74: #{mlb_forward.1} parent=51 // pred_check_branch
          %680 = sbr.rel (%p678) target = $region76
        $region75: #{mlb_forward.1} parent=51 // pred_region
          %s682 = ssub.s32 128, 128
          %683 = vsyncadd %s674, %s682
          %s684 = smul.addr %s29, 128
          %s685 = scalar_lea.hbm %s8, %s684
          %s687 = sshll.u32 %s677, 4
          %s688 = int_to_ptr.vmem [resolvable:$true] %s687
          %690 = dma.vmem_to_hbm [thread:$0]  %s688, 128, %s685, %s674
        $region76: #{mlb_forward.1} parent=51 // pred_fallthru
          _
      $region52: #{mlb_forward.1} parent=5 // pred_fallthru
        _
      %p691 = scmp.le.s32.totalorder 2, %s24
      // Predicated region
      $region77: #{mlb_forward.1} parent=5 // pred_check
        %p692 = pneg %p691
      $region78: #{mlb_forward.1} parent=5 // pred_check_branch
        %694 = sbr.rel (%p692) target = $region80
      $region79: #{mlb_forward.1} parent=5 // pred_region
        %s695 = ssub.s32 %s24, 2
        // Predicated region
        $region81: #{mlb_forward.1} parent=79 // pred_check
          %p696 = pneg %p231
        $region82: #{mlb_forward.1} parent=79 // pred_check_branch
          %698 = sbr.rel (%p696) target = $region84
        $region83: #{mlb_forward.1} parent=79 // pred_region
          %s699 = sand.u32 %s216, 1
          %s700 = scalar_lea.sflag [#allocation4], %s699
          %s701 = sand.u32 %s216, 1
          %s702 = smul.addr %s701, 8
          %s703 = scalar_lea.vmem [#allocation11], %s702
          %704 = dma.done %s700, 128
        $region84: #{mlb_forward.1} parent=79 // pred_fallthru
          _
      $region80: #{mlb_forward.1} parent=5 // pred_fallthru
        _
    $region6: #{mlb_forward.1} parent=1 // loop_footer
      %s28 = sadd.s32 1, %s24
    $region7: #{mlb_forward.1} parent=1 // loop_footer_branch
      %23 = sbr.rel target = $region3
    $region8: #{mlb_forward.1} parent=1 // loop_exit
      _
    %705 = vsyncpa [#allocation3], 1
    %s706 = scalar_lea.sflag [#allocation3], 1
    %707 = vsyncpa %s706, 1
    %708 = vsyncpa [#allocation6], 1
    %s709 = scalar_lea.sflag [#allocation6], 1
    %710 = vsyncpa %s709, 1
    %711 = vsyncpa [#allocation9], 1
    %712 = vsyncpa [#allocation4], 1
    %s713 = scalar_lea.sflag [#allocation4], 1
    %714 = vsyncpa %s713, 1

// kernel: mlb_forward.1
$region0: #{mlb_forward.1}
  #allocation0 [shape = 'u32[]', space=smem, size = 0x4, offset = 0x4, fixed_abs, tag = 'smem constant byte address 0x4 - core index']
  #allocation1 [shape = 'u32[144,128]{1,0:T(1,128)}', space=vmem, size = 0x12000, scoped, tag = 'internal scratch']
  %s0 = inlined_call_operand.hbm [shape: f32[16,32], index: 0, kind: input, shape index: {}]
  %s1 = inlined_call_operand.hbm [shape: f32[16,48], index: 1, kind: input, shape index: {}]
  %s2 = inlined_call_operand.hbm [shape: f32[32,128], index: 2, kind: input, shape index: {}]
  %s3 = inlined_call_operand.vmem [shape: f32[1,128], index: 3, kind: input, shape index: {}]
  %s4 = inlined_call_operand.hbm [shape: f32[48,128], index: 4, kind: input, shape index: {}]
  %s5 = inlined_call_operand.vmem [shape: f32[1,128], index: 5, kind: input, shape index: {}]
  %s6 = inlined_call_operand.hbm [shape: f32[128,128], index: 6, kind: input, shape index: {}]
  %s7 = inlined_call_operand.vmem [shape: f32[1,128], index: 7, kind: input, shape index: {}]
  %s8 = inlined_call_operand.hbm [shape: f32[16,128], index: 8, kind: output, shape index: {}]
  %s9 = sld [smem:[#allocation0]]
  $region85: #{mlb_forward.1} parent=0
    _
  %s11 = ssub.s32 1, %s9
  %s12 = scalar_select 0, %s11, %s9
  $region1: #{mlb_forward.1} parent=0
    #allocation2 [shape = 'u8[8192]{0}', space=vmem, size = 0x2000, scoped, tag = 'input window, operand 0']
    #allocation3 [shape = 's32[2]{0}', space=sflag, size = 0x8, scoped, tag = 'scoped memory for mlb_forward.1']
    #allocation4 [shape = 's32[2]{0}', space=sflag, size = 0x8, scoped, tag = 'scoped memory for mlb_forward.1']
    #allocation5 [shape = 'u8[8192]{0}', space=vmem, size = 0x2000, scoped, tag = 'input window, operand 1']
    #allocation6 [shape = 's32[2]{0}', space=sflag, size = 0x8, scoped, tag = 'scoped memory for mlb_forward.1']
    #allocation7 [shape = 'u8[16384]{0}', space=vmem, size = 0x4000, scoped, tag = 'input window, operand 2, single buffered']
    #allocation8 [shape = 'u8[24576]{0}', space=vmem, size = 0x6000, scoped, tag = 'input window, operand 4, single buffered']
    #allocation9 [shape = 's32[1]{0}', space=sflag, size = 0x4, scoped, tag = 'scoped memory for mlb_forward.1']
    #allocation10 [shape = 'u8[65536]{0}', space=vmem, size = 0x10000, scoped, tag = 'input window, operand 6, single buffered']
    #allocation11 [shape = 'u8[8192]{0}', space=vmem, size = 0x2000, scoped, tag = 'output window, operand 0']
    %13 = vsyncpa [#allocation3], 0
    %s14 = scalar_lea.sflag [#allocation3], 1
    %15 = vsyncpa %s14, 0
    %16 = vsyncpa [#allocation6], 0
    %s17 = scalar_lea.sflag [#allocation6], 1
    %18 = vsyncpa %s17, 0
    %19 = vsyncpa [#allocation9], 0
    %20 = vsyncpa [#allocation4], 0
    %s21 = scalar_lea.sflag [#allocation4], 1
    %22 = vsyncpa %s21, 0
    loop: start=0, step=1, limit=4
    $region2: #{mlb_forward.1} parent=1 // loop_pre_header
      _
    $region3: #{mlb_forward.1} parent=1 // loop_header
      %s24 = sphi 0, %s28
      %p25 = scmp.ge.s32.totalorder %s24, 4
      %s34 = sphi 0, %s36
      %s37 = sphi 0, %s34
      %s38 = sphi 0, %s37
      %s54 = sphi 0, %s38
      %s60 = sphi 0, %s62
      %s63 = sphi 0, %s60
      %s64 = sphi 0, %s63
      %s80 = sphi 0, %s64
      %s84 = sphi 0, %s84
      %s86 = sphi 0, %s84
      %s87 = sphi 0, %s86
      %s101 = sphi 0, %s87
      %s105 = sphi 0, %s105
      %s107 = sphi 0, %s105
      %s108 = sphi 0, %s107
      %s122 = sphi 0, %s108
      %s126 = sphi 0, %s126
      %s128 = sphi 0, %s126
      %s129 = sphi 0, %s128
      %s143 = sphi 0, %s129
      %s147 = sphi 0, %s147
      %s149 = sphi 0, %s147
      %s150 = sphi 0, %s149
      %s164 = sphi 0, %s150
      %s168 = sphi 0, %s168
      %s170 = sphi 0, %s168
      %s171 = sphi 0, %s170
      %s185 = sphi 0, %s171
      %s189 = sphi 0, %s189
      %s191 = sphi 0, %s189
      %s192 = sphi 0, %s191
      %s206 = sphi 0, %s192
      %s212 = sphi 0, %s214
      %s215 = sphi 0, %s212
      %s216 = sphi 0, %s215
      %s232 = sphi 0, %s216
    $region4: #{mlb_forward.1} parent=1 // loop_header_branch
      %27 = sbr.rel (%p25) target = $region8
    $region5: #{mlb_forward.1} parent=1 // loop_body
      %s29 = ssub.s32 %s24, 1
      %s30 = ssub.s32 %s24, 2
      %s31 = sadd.s32 %s24, 1
      %s32 = ssub.s32 %s24, %s31
      %p33 = scmp.eq.s32.totalorder %s32, 0
      %s35 = sadd.s32 %s34, 1
      %s36 = scalar_select %p33, %s34, %s35
      %p39 = pneg %p33
      %p40 = scmp.eq.s32.totalorder %s24, 1
      %p41 = por %p39, %p40
      %p42 = scmp.ne.s32.totalorder %s34, %s37
      %p43 = scmp.eq.s32.totalorder %s24, 0
      %p44 = por %p42, %p43
      %p45 = scmp.ne.s32.totalorder %s34, %s37
      %p46 = scmp.eq.s32.totalorder %s29, 1
      %p47 = por %p45, %p46
      %p48 = scmp.ne.s32.totalorder %s37, %s38
      %p49 = scmp.eq.s32.totalorder %s29, 0
      %p50 = por %p48, %p49
      %p51 = scmp.ne.s32.totalorder %s37, %s38
      %p52 = scmp.eq.s32.totalorder %s30, 1
      %p53 = por %p51, %p52
      %p55 = scmp.ne.s32.totalorder %s38, %s54
      %p56 = scmp.eq.s32.totalorder %s30, 0
      %p57 = por %p55, %p56
      %s58 = ssub.s32 %s24, %s31
      %p59 = scmp.eq.s32.totalorder %s58, 0
      %s61 = sadd.s32 %s60, 1
      %s62 = scalar_select %p59, %s60, %s61
      %p65 = pneg %p59
      %p66 = scmp.eq.s32.totalorder %s24, 1
      %p67 = por %p65, %p66
      %p68 = scmp.ne.s32.totalorder %s60, %s63
      %p69 = scmp.eq.s32.totalorder %s24, 0
      %p70 = por %p68, %p69
      %p71 = scmp.ne.s32.totalorder %s60, %s63
      %p72 = scmp.eq.s32.totalorder %s29, 1
      %p73 = por %p71, %p72
      %p74 = scmp.ne.s32.totalorder %s63, %s64
      %p75 = scmp.eq.s32.totalorder %s29, 0
      %p76 = por %p74, %p75
      %p77 = scmp.ne.s32.totalorder %s63, %s64
      %p78 = scmp.eq.s32.totalorder %s30, 1
      %p79 = por %p77, %p78
      %p81 = scmp.ne.s32.totalorder %s64, %s80
      %p82 = scmp.eq.s32.totalorder %s30, 0
      %p83 = por %p81, %p82
      %s85 = sadd.s32 %s84, 1
      %p88 = scmp.eq.s32.totalorder %s24, 1
      %p89 = scmp.ne.s32.totalorder %s84, %s86
      %p90 = scmp.eq.s32.totalorder %s24, 0
      %p91 = por %p89, %p90
      %p92 = scmp.ne.s32.totalorder %s84, %s86
      %p93 = scmp.eq.s32.totalorder %s29, 1
      %p94 = por %p92, %p93
      %p95 = scmp.ne.s32.totalorder %s86, %s87
      %p96 = scmp.eq.s32.totalorder %s29, 0
      %p97 = por %p95, %p96
      %p98 = scmp.ne.s32.totalorder %s86, %s87
      %p99 = scmp.eq.s32.totalorder %s30, 1
      %p100 = por %p98, %p99
      %p102 = scmp.ne.s32.totalorder %s87, %s101
      %p103 = scmp.eq.s32.totalorder %s30, 0
      %p104 = por %p102, %p103
      %s106 = sadd.s32 %s105, 1
      %p109 = scmp.eq.s32.totalorder %s24, 1
      %p110 = scmp.ne.s32.totalorder %s105, %s107
      %p111 = scmp.eq.s32.totalorder %s24, 0
      %p112 = por %p110, %p111
      %p113 = scmp.ne.s32.totalorder %s105, %s107
      %p114 = scmp.eq.s32.totalorder %s29, 1
      %p115 = por %p113, %p114
      %p116 = scmp.ne.s32.totalorder %s107, %s108
      %p117 = scmp.eq.s32.totalorder %s29, 0
      %p118 = por %p116, %p117
      %p119 = scmp.ne.s32.totalorder %s107, %s108
      %p120 = scmp.eq.s32.totalorder %s30, 1
      %p121 = por %p119, %p120
      %p123 = scmp.ne.s32.totalorder %s108, %s122
      %p124 = scmp.eq.s32.totalorder %s30, 0
      %p125 = por %p123, %p124
      %s127 = sadd.s32 %s126, 1
      %p130 = scmp.eq.s32.totalorder %s24, 1
      %p131 = scmp.ne.s32.totalorder %s126, %s128
      %p132 = scmp.eq.s32.totalorder %s24, 0
      %p133 = por %p131, %p132
      %p134 = scmp.ne.s32.totalorder %s126, %s128
      %p135 = scmp.eq.s32.totalorder %s29, 1
      %p136 = por %p134, %p135
      %p137 = scmp.ne.s32.totalorder %s128, %s129
      %p138 = scmp.eq.s32.totalorder %s29, 0
      %p139 = por %p137, %p138
      %p140 = scmp.ne.s32.totalorder %s128, %s129
      %p141 = scmp.eq.s32.totalorder %s30, 1
      %p142 = por %p140, %p141
      %p144 = scmp.ne.s32.totalorder %s129, %s143
      %p145 = scmp.eq.s32.totalorder %s30, 0
      %p146 = por %p144, %p145
      %s148 = sadd.s32 %s147, 1
      %p151 = scmp.eq.s32.totalorder %s24, 1
      %p152 = scmp.ne.s32.totalorder %s147, %s149
      %p153 = scmp.eq.s32.totalorder %s24, 0
      %p154 = por %p152, %p153
      %p155 = scmp.ne.s32.totalorder %s147, %s149
      %p156 = scmp.eq.s32.totalorder %s29, 1
      %p157 = por %p155, %p156
      %p158 = scmp.ne.s32.totalorder %s149, %s150
      %p159 = scmp.eq.s32.totalorder %s29, 0
      %p160 = por %p158, %p159
      %p161 = scmp.ne.s32.totalorder %s149, %s150
      %p162 = scmp.eq.s32.totalorder %s30, 1
      %p163 = por %p161, %p162
      %p165 = scmp.ne.s32.totalorder %s150, %s164
      %p166 = scmp.eq.s32.totalorder %s30, 0
      %p167 = por %p165, %p166
      %s169 = sadd.s32 %s168, 1
      %p172 = scmp.eq.s32.totalorder %s24, 1
      %p173 = scmp.ne.s32.totalorder %s168, %s170
      %p174 = scmp.eq.s32.totalorder %s24, 0
      %p175 = por %p173, %p174
      %p176 = scmp.ne.s32.totalorder %s168, %s170
      %p177 = scmp.eq.s32.totalorder %s29, 1
      %p178 = por %p176, %p177
      %p179 = scmp.ne.s32.totalorder %s170, %s171
      %p180 = scmp.eq.s32.totalorder %s29, 0
      %p181 = por %p179, %p180
      %p182 = scmp.ne.s32.totalorder %s170, %s171
      %p183 = scmp.eq.s32.totalorder %s30, 1
      %p184 = por %p182, %p183
      %p186 = scmp.ne.s32.totalorder %s171, %s185
      %p187 = scmp.eq.s32.totalorder %s30, 0
      %p188 = por %p186, %p187
      %s190 = sadd.s32 %s189, 1
      %p193 = scmp.eq.s32.totalorder %s24, 1
      %p194 = scmp.ne.s32.totalorder %s189, %s191
      %p195 = scmp.eq.s32.totalorder %s24, 0
      %p196 = por %p194, %p195
      %p197 = scmp.ne.s32.totalorder %s189, %s191
      %p198 = scmp.eq.s32.totalorder %s29, 1
      %p199 = por %p197, %p198
      %p200 = scmp.ne.s32.totalorder %s191, %s192
      %p201 = scmp.eq.s32.totalorder %s29, 0
      %p202 = por %p200, %p201
      %p203 = scmp.ne.s32.totalorder %s191, %s192
      %p204 = scmp.eq.s32.totalorder %s30, 1
      %p205 = por %p203, %p204
      %p207 = scmp.ne.s32.totalorder %s192, %s206
      %p208 = scmp.eq.s32.totalorder %s30, 0
      %p209 = por %p207, %p208
      %s210 = ssub.s32 %s24, %s31
      %p211 = scmp.eq.s32.totalorder %s210, 0
      %s213 = sadd.s32 %s212, 1
      %s214 = scalar_select %p211, %s212, %s213
      %p217 = pneg %p211
      %p218 = scmp.eq.s32.totalorder %s24, 1
      %p219 = por %p217, %p218
      %p220 = scmp.ne.s32.totalorder %s212, %s215
      %p221 = scmp.eq.s32.totalorder %s24, 0
      %p222 = por %p220, %p221
      %p223 = scmp.ne.s32.totalorder %s212, %s215
      %p224 = scmp.eq.s32.totalorder %s29, 1
      %p225 = por %p223, %p224
      %p226 = scmp.ne.s32.totalorder %s215, %s216
      %p227 = scmp.eq.s32.totalorder %s29, 0
      %p228 = por %p226, %p227
      %p229 = scmp.ne.s32.totalorder %s215, %s216
      %p230 = scmp.eq.s32.totalorder %s30, 1
      %p231 = por %p229, %p230
      %p233 = scmp.ne.s32.totalorder %s216, %s232
      %p234 = scmp.eq.s32.totalorder %s30, 0
      %p235 = por %p233, %p234
      %p236 = scmp.le.s32.totalorder 1, %s24
      %p237 = scmp.lt.s32.totalorder %s24, 3
      %p238 = pnand %p236, %p237
      %p239 = pneg %p238
      // Predicated region
      $region9: #{mlb_forward.1} parent=5 // pred_check
        _
      $region10: #{mlb_forward.1} parent=5 // pred_check_branch
        %241 = sbr.rel (%p238) target = $region12
      $region11: #{mlb_forward.1} parent=5 // pred_region
        %s242 = ssub.s32 %s24, 1
        // Predicated region
        $region13: #{mlb_forward.1} parent=11 // pred_check
          %p243 = pneg %p97
        $region14: #{mlb_forward.1} parent=11 // pred_check_branch
          %245 = sbr.rel (%p243) target = $region16
        $region15: #{mlb_forward.1} parent=11 // pred_region
          %s247 = ssub.s32 512, 512
          %248 = vsyncadd [#allocation6], %s247
          %s249 = sshll.u32 [#allocation7], 4
          %s250 = int_to_ptr.vmem [resolvable:$true] %s249
          %255 = dma.hbm_to_vmem [thread:$0]  %s2, 512, %s250, [#allocation6], 128, 128, 8
        $region16: #{mlb_forward.1} parent=11 // pred_fallthru
          _
        // Predicated region
        $region17: #{mlb_forward.1} parent=11 // pred_check
          %p256 = pneg %p118
        $region18: #{mlb_forward.1} parent=11 // pred_check_branch
          %258 = sbr.rel (%p256) target = $region20
        $region19: #{mlb_forward.1} parent=11 // pred_region
          _
        $region20: #{mlb_forward.1} parent=11 // pred_fallthru
          _
        // Predicated region
        $region21: #{mlb_forward.1} parent=11 // pred_check
          %p259 = pneg %p139
        $region22: #{mlb_forward.1} parent=11 // pred_check_branch
          %261 = sbr.rel (%p259) target = $region24
        $region23: #{mlb_forward.1} parent=11 // pred_region
          %s263 = ssub.s32 768, 768
          %264 = vsyncadd [#allocation9], %s263
          %s265 = sshll.u32 [#allocation8], 4
          %s266 = int_to_ptr.vmem [resolvable:$true] %s265
          %271 = dma.hbm_to_vmem [thread:$0]  %s4, 768, %s266, [#allocation9], 128, 128, 8
        $region24: #{mlb_forward.1} parent=11 // pred_fallthru
          _
        // Predicated region
        $region25: #{mlb_forward.1} parent=11 // pred_check
          %p272 = pneg %p160
        $region26: #{mlb_forward.1} parent=11 // pred_check_branch
          %274 = sbr.rel (%p272) target = $region28
        $region27: #{mlb_forward.1} parent=11 // pred_region
          _
        $region28: #{mlb_forward.1} parent=11 // pred_fallthru
          _
        // Predicated region
        $region29: #{mlb_forward.1} parent=11 // pred_check
          %p275 = pneg %p181
        $region30: #{mlb_forward.1} parent=11 // pred_check_branch
          %277 = sbr.rel (%p275) target = $region32
        $region31: #{mlb_forward.1} parent=11 // pred_region
          %s279 = ssub.s32 2048, 2048
          %280 = vsyncadd [#allocation9], %s279
          %s281 = sshll.u32 [#allocation10], 4
          %s282 = int_to_ptr.vmem [resolvable:$true] %s281
          %287 = dma.hbm_to_vmem [thread:$0]  %s6, 2048, %s282, [#allocation9], 128, 128, 8
        $region32: #{mlb_forward.1} parent=11 // pred_fallthru
          _
        // Predicated region
        $region33: #{mlb_forward.1} parent=11 // pred_check
          %p288 = pneg %p202
        $region34: #{mlb_forward.1} parent=11 // pred_check_branch
          %290 = sbr.rel (%p288) target = $region36
        $region35: #{mlb_forward.1} parent=11 // pred_region
          _
        $region36: #{mlb_forward.1} parent=11 // pred_fallthru
          _
      $region12: #{mlb_forward.1} parent=5 // pred_fallthru
        _
      %p291 = scmp.lt.s32.totalorder %s24, 2
      // Predicated region
      $region37: #{mlb_forward.1} parent=5 // pred_check
        %p292 = pneg %p291
      $region38: #{mlb_forward.1} parent=5 // pred_check_branch
        %294 = sbr.rel (%p292) target = $region40
      $region39: #{mlb_forward.1} parent=5 // pred_region
        // Predicated region
        $region41: #{mlb_forward.1} parent=39 // pred_check
          %p295 = pneg %p44
        $region42: #{mlb_forward.1} parent=39 // pred_check_branch
          %297 = sbr.rel (%p295) target = $region44
        $region43: #{mlb_forward.1} parent=39 // pred_region
          %s298 = sand.u32 %s34, 1
          %s299 = scalar_lea.sflag [#allocation3], %s298
          %s300 = sand.u32 %s34, 1
          %s301 = smul.addr %s300, 8
          %s302 = scalar_lea.vmem [#allocation2], %s301
          %s304 = ssub.s32 128, 128
          %305 = vsyncadd %s299, %s304
          %s306 = smul.addr %s24, 128
          %s307 = scalar_lea.hbm %s0, %s306
          %s309 = sshll.u32 %s302, 4
          %s310 = int_to_ptr.vmem [resolvable:$true] %s309
          %312 = dma.hbm_to_vmem [thread:$0]  %s307, 128, %s310, %s299
        $region44: #{mlb_forward.1} parent=39 // pred_fallthru
          _
        // Predicated region
        $region45: #{mlb_forward.1} parent=39 // pred_check
          %p313 = pneg %p70
        $region46: #{mlb_forward.1} parent=39 // pred_check_branch
          %315 = sbr.rel (%p313) target = $region48
        $region47: #{mlb_forward.1} parent=39 // pred_region
          %s316 = sand.u32 %s24, 1
          %s317 = scalar_lea.sflag [#allocation6], %s316
          %s318 = sand.u32 %s60, 1
          %s319 = smul.addr %s318, 8
          %s320 = scalar_lea.vmem [#allocation5], %s319
          %s322 = ssub.s32 128, 128
          %323 = vsyncadd %s317, %s322
          %s324 = smul.addr %s24, 128
          %s325 = scalar_lea.hbm %s1, %s324
          %s327 = sshll.u32 %s320, 4
          %s328 = int_to_ptr.vmem [resolvable:$true] %s327
          %330 = dma.hbm_to_vmem [thread:$0]  %s325, 128, %s328, %s317
        $region48: #{mlb_forward.1} parent=39 // pred_fallthru
          _
      $region40: #{mlb_forward.1} parent=5 // pred_fallthru
        _
      %p331 = scmp.le.s32.totalorder 1, %s24
      %p332 = scmp.lt.s32.totalorder %s24, 3
      %p333 = pnand %p331, %p332
      %p334 = pneg %p333
      // Predicated region
      $region49: #{mlb_forward.1} parent=5 // pred_check
        _
      $region50: #{mlb_forward.1} parent=5 // pred_check_branch
        %336 = sbr.rel (%p333) target = $region52
      $region51: #{mlb_forward.1} parent=5 // pred_region
        %s337 = ssub.s32 %s24, 1
        %s338 = sand.u32 %s37, 1
        %s339 = scalar_lea.sflag [#allocation3], %s338
        %s340 = sand.u32 %s37, 1
        %s341 = smul.addr %s340, 8
        %s342 = scalar_lea.vmem [#allocation2], %s341
        // Predicated region
        $region53: #{mlb_forward.1} parent=51 // pred_check
          %p343 = pneg %p50
        $region54: #{mlb_forward.1} parent=51 // pred_check_branch
          %345 = sbr.rel (%p343) target = $region56
        $region55: #{mlb_forward.1} parent=51 // pred_region
          %346 = dma.done %s339, 128
        $region56: #{mlb_forward.1} parent=51 // pred_fallthru
          _
        %s347 = sand.u32 %s29, 1
        %s348 = scalar_lea.sflag [#allocation6], %s347
        %s349 = sand.u32 %s63, 1
        %s350 = smul.addr %s349, 8
        %s351 = scalar_lea.vmem [#allocation5], %s350
        // Predicated region
        $region57: #{mlb_forward.1} parent=51 // pred_check
          %p352 = pneg %p76
        $region58: #{mlb_forward.1} parent=51 // pred_check_branch
          %354 = sbr.rel (%p352) target = $region60
        $region59: #{mlb_forward.1} parent=51 // pred_region
          %355 = dma.done %s348, 128
        $region60: #{mlb_forward.1} parent=51 // pred_fallthru
          _
        // Predicated region
        $region61: #{mlb_forward.1} parent=51 // pred_check
          %p356 = pneg %p97
        $region62: #{mlb_forward.1} parent=51 // pred_check_branch
          %358 = sbr.rel (%p356) target = $region64
        $region63: #{mlb_forward.1} parent=51 // pred_region
          %359 = dma.done [#allocation6], 512
        $region64: #{mlb_forward.1} parent=51 // pred_fallthru
          _
        // Predicated region
        $region65: #{mlb_forward.1} parent=51 // pred_check
          %p360 = pneg %p139
        $region66: #{mlb_forward.1} parent=51 // pred_check_branch
          %362 = sbr.rel (%p360) target = $region68
        $region67: #{mlb_forward.1} parent=51 // pred_region
          %363 = dma.done [#allocation9], 768
        $region68: #{mlb_forward.1} parent=51 // pred_fallthru
          _
        // Predicated region
        $region69: #{mlb_forward.1} parent=51 // pred_check
          %p364 = pneg %p181
        $region70: #{mlb_forward.1} parent=51 // pred_check_branch
          %366 = sbr.rel (%p364) target = $region72
        $region71: #{mlb_forward.1} parent=51 // pred_region
          %367 = dma.done [#allocation9], 2048
        $region72: #{mlb_forward.1} parent=51 // pred_fallthru
          _
        %s368 = sand.u32 %s37, 1
        %s369 = scalar_lea.sflag [#allocation3], %s368
        %s370 = sand.u32 %s37, 1
        %s371 = smul.addr %s370, 8
        %s372 = scalar_lea.vmem [#allocation2], %s371
        %p373 = pneg %p50
        %p374 = pneg %p47
        %s375 = sand.u32 %s29, 1
        %s376 = scalar_lea.sflag [#allocation6], %s375
        %s377 = sand.u32 %s63, 1
        %s378 = smul.addr %s377, 8
        %s379 = scalar_lea.vmem [#allocation5], %s378
        %p380 = pneg %p76
        %p381 = pneg %p73
        %p382 = pneg %p97
        %p383 = pneg %p94
        %p384 = pneg %p118
        %p385 = pneg %p115
        %p386 = pneg %p139
        %p387 = pneg %p136
        %p388 = pneg %p160
        %p389 = pneg %p157
        %p390 = pneg %p181
        %p391 = pneg %p178
        %p392 = pneg %p202
        %p393 = pneg %p199
        %p394 = pneg %p228
        %p395 = pneg %p225
        %s396 = sand.u32 %s215, 1
        %s397 = scalar_lea.sflag [#allocation4], %s396
        %s398 = sand.u32 %s215, 1
        %s399 = smul.addr %s398, 8
        %s400 = scalar_lea.vmem [#allocation11], %s399
        %v401 = vld [vmem:[%s342] sm:$0xff]
        %v402 = vld [vmem:[#allocation7] sm:$0xff]
        %v403 = vld [vmem:[#allocation7 + $0x8] sm:$0xff]
        %v404 = vld [vmem:[#allocation7 + $0x10] sm:$0xff]
        %v405 = vld [vmem:[#allocation7 + $0x18] sm:$0xff]
        %v406 = vld [vmem:[%s3] sm:$0x1]
        %v408 = vlaneseq
        %v409 = vshrl.u32 %v408, 7
        %v410 = vsub.s32 0, %v409
        %v411 = vrot.slane %v406, %v410
        %vm413 = vcmask 261120
        %v415 = vsel %vm413, %v401, 0
        %417 = vmatprep.subr.mxu0 0.0
        %418 = vmatpush1.msra.mxu0 %v402
        %419 = vmatprep.subr.mxu0 0.0
        %420 = vmatpush1.msra.mxu0 %v403
        %421 = vmatprep.subr.mxu0 0.0
        %422 = vmatpush1.msra.mxu0 %v404
        %423 = vmatprep.subr.mxu0 0.0
        %424 = vmatpush1.msra.mxu0 %v405
        %425 = vmatprep.subr.mxu0 0.0
        %426 = vmatpush1.msra.mxu0 0.0
        %427 = vmatprep.subr.mxu0 0.0
        %428 = vmatpush1.msra.mxu0 0.0
        %429 = vmatprep.subr.mxu0 0.0
        %430 = vmatpush1.msra.mxu0 0.0
        %431 = vmatprep.subr.mxu0 0.0
        %432 = vmatpush1.msra.mxu0 0.0
        %433 = vmatprep.subr.mxu0 0.0
        %434 = vmatpush1.msra.mxu0 0.0
        %435 = vmatprep.subr.mxu0 0.0
        %436 = vmatpush1.msra.mxu0 0.0
        %437 = vmatprep.subr.mxu0 0.0
        %438 = vmatpush1.msra.mxu0 0.0
        %439 = vmatprep.subr.mxu0 0.0
        %440 = vmatpush1.msra.mxu0 0.0
        %441 = vmatprep.subr.mxu0 0.0
        %442 = vmatpush1.msra.mxu0 0.0
        %443 = vmatprep.subr.mxu0 0.0
        %444 = vmatpush1.msra.mxu0 0.0
        %445 = vmatprep.subr.mxu0 0.0
        %446 = vmatpush1.msra.mxu0 0.0
        %447 = vmatprep.subr.mxu0 0.0
        %448 = vmatpush1.msra.mxu0 0.0
        %449 = vmatprep.subr.mxu0 0.0
        %450 = vmatpush1.msra.mxu0 0.0
        %451 = vmatprep.subr.mxu0 0.0
        %452 = vmatpush1.msra.mxu0 0.0
        %453 = vmatprep.subr.mxu0 0.0
        %454 = vmatpush1.msra.mxu0 0.0
        %455 = vmatprep.subr.mxu0 0.0
        %456 = vmatpush1.msra.mxu0 0.0
        %457 = vmatprep.subr.mxu0 0.0
        %458 = vmatpush1.msra.mxu0 0.0
        %459 = vmatprep.subr.mxu0 0.0
        %460 = vmatpush1.msra.mxu0 0.0
        %461 = vmatprep.subr.mxu0 0.0
        %462 = vmatpush1.msra.mxu0 0.0
        %463 = vmatprep.subr.mxu0 0.0
        %464 = vmatpush1.msra.mxu0 0.0
        %465 = vmatprep.subr.mxu0 0.0
        %466 = vmatpush1.msra.mxu0 0.0
        %467 = vmatprep.subr.mxu0 0.0
        %468 = vmatpush1.msra.mxu0 0.0
        %469 = vmatprep.subr.mxu0 0.0
        %470 = vmatpush1.msra.mxu0 0.0
        %471 = vmatprep.subr.mxu0 0.0
        %472 = vmatpush1.msra.mxu0 0.0
        %473 = vmatprep.subr.mxu0 0.0
        %474 = vmatpush1.msra.mxu0 0.0
        %475 = vmatprep.subr.mxu0 0.0
        %476 = vmatpush1.msra.mxu0 0.0
        %477 = vmatprep.subr.mxu0 0.0
        %478 = vmatpush1.msra.mxu0 0.0
        %479 = vmatprep.subr.mxu0 0.0
        %480 = vmatpush1.msra.mxu0 0.0
        %481 = vmatprep.mubr.f32.mxu0 0.0
        %482 = vmatmul.mubr.f32.gmra.mrb[0].mxu0 %v415
        %v483 = vpop.f32.mrb[0].mxu0
        %v484 = vadd.f32 %v411, %v483
        %v485 = vpop.f32.mrb[0].mxu0
        %486 = vdwg.mxu0
        %v487 = vld [vmem:[%s351] sm:$0xff]
        %v488 = vld [vmem:[#allocation8] sm:$0xff]
        %v489 = vld [vmem:[#allocation8 + $0x8] sm:$0xff]
        %v490 = vld [vmem:[#allocation8 + $0x10] sm:$0xff]
        %v491 = vld [vmem:[#allocation8 + $0x18] sm:$0xff]
        %v492 = vld [vmem:[#allocation8 + $0x20] sm:$0xff]
        %v493 = vld [vmem:[#allocation8 + $0x28] sm:$0xff]
        %v494 = vld [vmem:[%s5] sm:$0x1]
        %v496 = vlaneseq
        %v497 = vshrl.u32 %v496, 7
        %v498 = vsub.s32 0, %v497
        %v499 = vrot.slane %v494, %v498
        %vm501 = vcmask 392192
        %v503 = vsel %vm501, %v487, 0
        %505 = vmatprep.subr.mxu0 0.0
        %506 = vmatpush1.msra.mxu0 %v488
        %507 = vmatprep.subr.mxu0 0.0
        %508 = vmatpush1.msra.mxu0 %v489
        %509 = vmatprep.subr.mxu0 0.0
        %510 = vmatpush1.msra.mxu0 %v490
        %511 = vmatprep.subr.mxu0 0.0
        %512 = vmatpush1.msra.mxu0 %v491
        %513 = vmatprep.subr.mxu0 0.0
        %514 = vmatpush1.msra.mxu0 %v492
        %515 = vmatprep.subr.mxu0 0.0
        %516 = vmatpush1.msra.mxu0 %v493
        %517 = vmatprep.subr.mxu0 0.0
        %518 = vmatpush1.msra.mxu0 0.0
        %519 = vmatprep.subr.mxu0 0.0
        %520 = vmatpush1.msra.mxu0 0.0
        %521 = vmatprep.subr.mxu0 0.0
        %522 = vmatpush1.msra.mxu0 0.0
        %523 = vmatprep.subr.mxu0 0.0
        %524 = vmatpush1.msra.mxu0 0.0
        %525 = vmatprep.subr.mxu0 0.0
        %526 = vmatpush1.msra.mxu0 0.0
        %527 = vmatprep.subr.mxu0 0.0
        %528 = vmatpush1.msra.mxu0 0.0
        %529 = vmatprep.subr.mxu0 0.0
        %530 = vmatpush1.msra.mxu0 0.0
        %531 = vmatprep.subr.mxu0 0.0
        %532 = vmatpush1.msra.mxu0 0.0
        %533 = vmatprep.subr.mxu0 0.0
        %534 = vmatpush1.msra.mxu0 0.0
        %535 = vmatprep.subr.mxu0 0.0
        %536 = vmatpush1.msra.mxu0 0.0
        %537 = vmatprep.subr.mxu0 0.0
        %538 = vmatpush1.msra.mxu0 0.0
        %539 = vmatprep.subr.mxu0 0.0
        %540 = vmatpush1.msra.mxu0 0.0
        %541 = vmatprep.subr.mxu0 0.0
        %542 = vmatpush1.msra.mxu0 0.0
        %543 = vmatprep.subr.mxu0 0.0
        %544 = vmatpush1.msra.mxu0 0.0
        %545 = vmatprep.subr.mxu0 0.0
        %546 = vmatpush1.msra.mxu0 0.0
        %547 = vmatprep.subr.mxu0 0.0
        %548 = vmatpush1.msra.mxu0 0.0
        %549 = vmatprep.subr.mxu0 0.0
        %550 = vmatpush1.msra.mxu0 0.0
        %551 = vmatprep.subr.mxu0 0.0
        %552 = vmatpush1.msra.mxu0 0.0
        %553 = vmatprep.subr.mxu0 0.0
        %554 = vmatpush1.msra.mxu0 0.0
        %555 = vmatprep.subr.mxu0 0.0
        %556 = vmatpush1.msra.mxu0 0.0
        %557 = vmatprep.subr.mxu0 0.0
        %558 = vmatpush1.msra.mxu0 0.0
        %559 = vmatprep.subr.mxu0 0.0
        %560 = vmatpush1.msra.mxu0 0.0
        %561 = vmatprep.subr.mxu0 0.0
        %562 = vmatpush1.msra.mxu0 0.0
        %563 = vmatprep.subr.mxu0 0.0
        %564 = vmatpush1.msra.mxu0 0.0
        %565 = vmatprep.subr.mxu0 0.0
        %566 = vmatpush1.msra.mxu0 0.0
        %567 = vmatprep.subr.mxu0 0.0
        %568 = vmatpush1.msra.mxu0 0.0
        %569 = vmatprep.mubr.f32.mxu0 0.0
        %570 = vmatmul.mubr.f32.gmra.mrb[0].mxu0 %v503
        %v571 = vpop.f32.mrb[0].mxu0
        %v572 = vadd.f32 %v499, %v571
        %v573 = vpop.f32.mrb[0].mxu0
        %574 = vdwg.mxu0
        %v575 = vmax.f32 %v484, 0.0
        %v576 = vmax.f32 %v572, 0.0
        %v577 = vmul.f32 %v575, %v576
        %v578 = vld [vmem:[#allocation10] sm:$0xff]
        %v579 = vld [vmem:[#allocation10 + $0x8] sm:$0xff]
        %v580 = vld [vmem:[#allocation10 + $0x10] sm:$0xff]
        %v581 = vld [vmem:[#allocation10 + $0x18] sm:$0xff]
        %v582 = vld [vmem:[#allocation10 + $0x20] sm:$0xff]
        %v583 = vld [vmem:[#allocation10 + $0x28] sm:$0xff]
        %v584 = vld [vmem:[#allocation10 + $0x30] sm:$0xff]
        %v585 = vld [vmem:[#allocation10 + $0x38] sm:$0xff]
        %v586 = vld [vmem:[#allocation10 + $0x40] sm:$0xff]
        %v587 = vld [vmem:[#allocation10 + $0x48] sm:$0xff]
        %v588 = vld [vmem:[#allocation10 + $0x50] sm:$0xff]
        %v589 = vld [vmem:[#allocation10 + $0x58] sm:$0xff]
        %v590 = vld [vmem:[#allocation10 + $0x60] sm:$0xff]
        %v591 = vld [vmem:[#allocation10 + $0x68] sm:$0xff]
        %v592 = vld [vmem:[#allocation10 + $0x70] sm:$0xff]
        %v593 = vld [vmem:[#allocation10 + $0x78] sm:$0xff]
        %v594 = vld [vmem:[%s7] sm:$0x1]
        %v596 = vlaneseq
        %v597 = vshrl.u32 %v596, 7
        %v598 = vsub.s32 0, %v597
        %v599 = vrot.slane %v594, %v598
        %601 = vmatprep.subr.mxu0 0.0
        %602 = vmatpush1.msra.mxu0 %v578
        %603 = vmatprep.subr.mxu0 0.0
        %604 = vmatpush1.msra.mxu0 %v579
        %605 = vmatprep.subr.mxu0 0.0
        %606 = vmatpush1.msra.mxu0 %v580
        %607 = vmatprep.subr.mxu0 0.0
        %608 = vmatpush1.msra.mxu0 %v581
        %609 = vmatprep.subr.mxu0 0.0
        %610 = vmatpush1.msra.mxu0 %v582
        %611 = vmatprep.subr.mxu0 0.0
        %612 = vmatpush1.msra.mxu0 %v583
        %613 = vmatprep.subr.mxu0 0.0
        %614 = vmatpush1.msra.mxu0 %v584
        %615 = vmatprep.subr.mxu0 0.0
        %616 = vmatpush1.msra.mxu0 %v585
        %617 = vmatprep.subr.mxu0 0.0
        %618 = vmatpush1.msra.mxu0 %v586
        %619 = vmatprep.subr.mxu0 0.0
        %620 = vmatpush1.msra.mxu0 %v587
        %621 = vmatprep.subr.mxu0 0.0
        %622 = vmatpush1.msra.mxu0 %v588
        %623 = vmatprep.subr.mxu0 0.0
        %624 = vmatpush1.msra.mxu0 %v589
        %625 = vmatprep.subr.mxu0 0.0
        %626 = vmatpush1.msra.mxu0 %v590
        %627 = vmatprep.subr.mxu0 0.0
        %628 = vmatpush1.msra.mxu0 %v591
        %629 = vmatprep.subr.mxu0 0.0
        %630 = vmatpush1.msra.mxu0 %v592
        %631 = vmatprep.subr.mxu0 0.0
        %632 = vmatpush1.msra.mxu0 %v593
        %633 = vmatprep.subr.mxu0 0.0
        %634 = vmatpush1.msra.mxu0 0.0
        %635 = vmatprep.subr.mxu0 0.0
        %636 = vmatpush1.msra.mxu0 0.0
        %637 = vmatprep.subr.mxu0 0.0
        %638 = vmatpush1.msra.mxu0 0.0
        %639 = vmatprep.subr.mxu0 0.0
        %640 = vmatpush1.msra.mxu0 0.0
        %641 = vmatprep.subr.mxu0 0.0
        %642 = vmatpush1.msra.mxu0 0.0
        %643 = vmatprep.subr.mxu0 0.0
        %644 = vmatpush1.msra.mxu0 0.0
        %645 = vmatprep.subr.mxu0 0.0
        %646 = vmatpush1.msra.mxu0 0.0
        %647 = vmatprep.subr.mxu0 0.0
        %648 = vmatpush1.msra.mxu0 0.0
        %649 = vmatprep.subr.mxu0 0.0
        %650 = vmatpush1.msra.mxu0 0.0
        %651 = vmatprep.subr.mxu0 0.0
        %652 = vmatpush1.msra.mxu0 0.0
        %653 = vmatprep.subr.mxu0 0.0
        %654 = vmatpush1.msra.mxu0 0.0
        %655 = vmatprep.subr.mxu0 0.0
        %656 = vmatpush1.msra.mxu0 0.0
        %657 = vmatprep.subr.mxu0 0.0
        %658 = vmatpush1.msra.mxu0 0.0
        %659 = vmatprep.subr.mxu0 0.0
        %660 = vmatpush1.msra.mxu0 0.0
        %661 = vmatprep.subr.mxu0 0.0
        %662 = vmatpush1.msra.mxu0 0.0
        %663 = vmatprep.subr.mxu0 0.0
        %664 = vmatpush1.msra.mxu0 0.0
        %665 = vmatprep.mubr.f32.mxu0 0.0
        %666 = vmatmul.mubr.f32.gmra.mrb[0].mxu0 %v577
        %v667 = vpop.f32.mrb[0].mxu0
        %v668 = vadd.f32 %v599, %v667
        %v669 = vpop.f32.mrb[0].mxu0
        %670 = vdwg.mxu0
        %v671 = vmax.f32 %v668, 0.0
        %672 = vst [vmem:[%s400] sm:$0xff] %v671
        %s673 = sand.u32 %s215, 1
        %s674 = scalar_lea.sflag [#allocation4], %s673
        %s675 = sand.u32 %s215, 1
        %s676 = smul.addr %s675, 8
        %s677 = scalar_lea.vmem [#allocation11], %s676
        // Predicated region
        $region73: #{mlb_forward.1} parent=51 // pred_check
          %p678 = pneg %p225
        $region74: #{mlb_forward.1} parent=51 // pred_check_branch
          %680 = sbr.rel (%p678) target = $region76
        $region75: #{mlb_forward.1} parent=51 // pred_region
          %s682 = ssub.s32 128, 128
          %683 = vsyncadd %s674, %s682
          %s684 = smul.addr %s29, 128
          %s685 = scalar_lea.hbm %s8, %s684
          %s687 = sshll.u32 %s677, 4
          %s688 = int_to_ptr.vmem [resolvable:$true] %s687
          %690 = dma.vmem_to_hbm [thread:$0]  %s688, 128, %s685, %s674
        $region76: #{mlb_forward.1} parent=51 // pred_fallthru
          _
      $region52: #{mlb_forward.1} parent=5 // pred_fallthru
        _
      %p691 = scmp.le.s32.totalorder 2, %s24
      // Predicated region
      $region77: #{mlb_forward.1} parent=5 // pred_check
        %p692 = pneg %p691
      $region78: #{mlb_forward.1} parent=5 // pred_check_branch
        %694 = sbr.rel (%p692) target = $region80
      $region79: #{mlb_forward.1} parent=5 // pred_region
        %s695 = ssub.s32 %s24, 2
        // Predicated region
        $region81: #{mlb_forward.1} parent=79 // pred_check
          %p696 = pneg %p231
        $region82: #{mlb_forward.1} parent=79 // pred_check_branch
          %698 = sbr.rel (%p696) target = $region84
        $region83: #{mlb_forward.1} parent=79 // pred_region
          %s699 = sand.u32 %s216, 1
          %s700 = scalar_lea.sflag [#allocation4], %s699
          %s701 = sand.u32 %s216, 1
          %s702 = smul.addr %s701, 8
          %s703 = scalar_lea.vmem [#allocation11], %s702
          %704 = dma.done %s700, 128
        $region84: #{mlb_forward.1} parent=79 // pred_fallthru
          _
      $region80: #{mlb_forward.1} parent=5 // pred_fallthru
        _
    $region6: #{mlb_forward.1} parent=1 // loop_footer
      %s28 = sadd.s32 1, %s24
    $region7: #{mlb_forward.1} parent=1 // loop_footer_branch
      %23 = sbr.rel target = $region3
    $region8: #{mlb_forward.1} parent=1 // loop_exit
      _
    %705 = vsyncpa [#allocation3], 1
    %s706 = scalar_lea.sflag [#allocation3], 1
    %707 = vsyncpa %s706, 1
    %708 = vsyncpa [#allocation6], 1
    %s709 = scalar_lea.sflag [#allocation6], 1
    %710 = vsyncpa %s709, 1
    %711 = vsyncpa [#allocation9], 1
    %712 = vsyncpa [#allocation4], 1
    %s713 = scalar_lea.sflag [#allocation4], 1
    %714 = vsyncpa %s713, 1

</llo_original>
